<compile_context>
chip_gen: v6e
topology: v6e:2x2x1
jax: 0.10.0
libtpu: 0.0.40
codegen_flags: <defaults>
</compile_context>

<pallas_src>
import functools

import numpy as np

import jax
import jax.numpy as jnp
from jax.experimental import pallas as pl
from jax.experimental.pallas import tpu as pltpu


_EPS = 1e-5


# ---------------------------------------------------------------------------
# Pallas kernel
# ---------------------------------------------------------------------------
def _inception_kernel(coords_ref, x_ref, w1_ref, w2_ref, w3_ref, bn_ref, o_ref,
                      *, h, w):
    x = x_ref[...]                                   # (Cin, M) f32
    m = x.shape[1]
    cq = w2_ref.shape[0]
    inv_m = 1.0 / float(m)

    # Per-column (h, w) coordinates -> edge masks (shared by conv taps & maxpool).
    coords = coords_ref[...]                         # (2, M) int32
    hpos = coords[0:1, :]
    wpos = coords[1:2, :]
    hmask = {d: jnp.logical_and(hpos + d >= 0, hpos + d < h) for d in range(-2, 3)}
    wmask = {d: jnp.logical_and(wpos + d >= 0, wpos + d < w) for d in range(-2, 3)}

    def shift(t, dh, dw, fill):
        # t[:, (n,hh,ww)] -> t[:, (n, hh+dh, ww+dw)], `fill` where the source is
        # outside the image.  XLU lane roll + VPU select; no MXU, O(M) data.
        if dh == 0 and dw == 0:
            return t
        rolled = pltpu.roll(t, shift=(-(dh * w + dw)) % m, axis=1)
        return jnp.where(jnp.logical_and(hmask[dh], wmask[dw]), rolled, fill)

    def dot32(a, b):
        # TODO(synk): cast operands to bf16 (keep f32 accumulation) on v6e/v7x at
        # realistic channel counts; f32 kept here for exactness at toy shapes.
        return jnp.dot(a, b, preferred_element_type=jnp.float32)

    gamma = bn_ref[0]                                # (6*Cq, 1)
    beta = bn_ref[1]                                 # (6*Cq, 1)

    def bn_relu(y, idx):
        # Training-mode BatchNorm2d (biased batch stats over N*H*W) folded into a
        # single per-channel scale of the centered activations, then ReLU.
        mean = jnp.sum(y, axis=1, keepdims=True) * inv_m
        d = y - mean
        var = jnp.sum(d * d, axis=1, keepdims=True) * inv_m
        a = gamma[idx * cq:(idx + 1) * cq] * jax.lax.rsqrt(var + _EPS)
        return jnp.maximum(d * a + beta[idx * cq:(idx + 1) * cq], 0.0)

    w1 = w1_ref[...]                                 # (4*Cq, Cin)

    # ---- 1x1 convT of branches 1/2/3 share RHS x: one MXU contraction --------
    y123 = dot32(w1[0:3 * cq, :], x)                 # (3*Cq, M)
    b1 = bn_relu(y123[0 * cq:1 * cq], 0)
    t2 = bn_relu(y123[1 * cq:2 * cq], 1)
    t3 = bn_relu(y123[2 * cq:3 * cq], 3)

    # ---- branch 2: 3x3 convT as ONE (Cq, 9*Cq) @ (9*Cq, M) contraction --------
    stack2 = [shift(t2, u - 1, v - 1, 0.0) for u in range(3) for v in range(3)]
    b2 = bn_relu(dot32(w2_ref[...], jnp.concatenate(stack2, axis=0)), 2)

    # ---- branch 3: 5x5 convT as ONE (Cq, 25*Cq) @ (25*Cq, M) contraction ------
    stack3 = [shift(t3, u - 2, v - 2, 0.0) for u in range(5) for v in range(5)]
    b3 = bn_relu(dot32(w3_ref[...], jnp.concatenate(stack3, axis=0)), 4)

    # ---- branch 4: in-kernel 3x3/s1/p1 maxpool (pad excluded) -> 1x1 -> BN ----
    neg = jnp.finfo(jnp.float32).min
    pooled = x
    for u in range(3):
        for v in range(3):
            if u == 1 and v == 1:
                continue
            pooled = jnp.maximum(pooled, shift(x, u - 1, v - 1, neg))
    b4 = bn_relu(dot32(w1[3 * cq:4 * cq, :], pooled), 5)

    # ---- single lane-dense (4*Cq, M) output slab (full (8,128) tiles) ---------
    o_ref[...] = jnp.concatenate([b1, b2, b3, b4], axis=0)


# ---------------------------------------------------------------------------
# Wrapper-side layout plumbing (parameter packing only; no data inflation)
# ---------------------------------------------------------------------------
def _one_by_one(wt):
    """ConvTranspose2d weight (Cin, Cq, 1, 1) -> equivalent 1x1 matrix (Cq, Cin)."""
    return jnp.transpose(wt[:, :, 0, 0], (1, 0))


def _to_tap_matrix(wt):
    """ConvTranspose2d weight (Cin_t, Cout_t, k, k) -> (Cout_t, k*k*Cin_t) packed so
    that columns kk*Cin:(kk+1)*Cin hold the equivalent-conv weight of tap
    kk = u*k + v, i.e. wt[:, :, k-1-u, k-1-v].T (flipped kernel)."""
    cin, cout, k, _ = wt.shape
    wflip = wt[:, :, ::-1, ::-1]
    taps = jnp.transpose(wflip, (2, 3, 1, 0)).reshape(k * k, cout, cin)
    return jnp.transpose(taps, (1, 0, 2)).reshape(cout, k * k * cin)


@jax.jit
def inception_forward(x_nchw, params):
    n, cin, h, w = x_nchw.shape
    m = n * h * w
    cq = params["wt1"].shape[1]
    out_feat = 4 * cq

    # Lane-dense (C, M) activation layout, m = (n*H + h)*W + w.
    x_cm = jnp.transpose(x_nchw, (1, 0, 2, 3)).reshape(cin, m)

    # Per-column spatial coordinates for the in-kernel edge masks.
    _, hi, wi = np.meshgrid(np.arange(n), np.arange(h), np.arange(w), indexing="ij")
    coords = jnp.asarray(np.stack([hi.ravel(), wi.ravel()]).astype(np.int32))  # (2, M)

    # Packed small parameters: one DMA each, lane-dense / single-tile shapes.
    w1x1 = jnp.concatenate([_one_by_one(params["wt1"]), _one_by_one(params["wt2a"]),
                            _one_by_one(params["wt3a"]), _one_by_one(params["wt4"])],
                           axis=0)                                  # (4*Cq, Cin)
    w2b = _to_tap_matrix(params["wt2b"])                            # (Cq,  9*Cq)
    w3b = _to_tap_matrix(params["wt3b"])                            # (Cq, 25*Cq)
    bn = jnp.stack([params["gamma"].reshape(-1),
                    params["beta"].reshape(-1)])[..., None]         # (2, 6*Cq, 1)

    vmem = pl.BlockSpec(memory_space=pltpu.MemorySpace.VMEM)
    out = pl.pallas_call(
        functools.partial(_inception_kernel, h=h, w=w),
        out_shape=jax.ShapeDtypeStruct((out_feat, m), jnp.float32),
        in_specs=[vmem] * 6,
        out_specs=vmem,
    )(coords, x_cm, w1x1, w2b, w3b, bn)
    # TODO(synk): add a pipelined grid over M (two-phase BN stats) + parallel
    # dimension_semantics before scaling beyond the toy size / for v7x megacore.

    # (4*Cq, M) -> (N, out_feat, H, W); channel order = cat([b1, b2, b3, b4])
    return jnp.transpose(out.reshape(out_feat, n, h, w), (1, 0, 2, 3))


# ---------------------------------------------------------------------------
# Parameters (ConvTranspose2d layout).  Conv biases omitted: a per-channel
# constant before training-mode BatchNorm is cancelled by the mean subtraction.
# ---------------------------------------------------------------------------
def init_params(key, in_feat, out_feat):
    assert out_feat % 4 == 0
    cq = out_feat // 4
    specs = {
        "wt1": (in_feat, cq, 1, 1),
        "wt2a": (in_feat, cq, 1, 1),
        "wt2b": (cq, cq, 3, 3),
        "wt3a": (in_feat, cq, 1, 1),
        "wt3b": (cq, cq, 5, 5),
        "wt4": (in_feat, cq, 1, 1),
    }
    params = {}
    keys = jax.random.split(key, len(specs) + 2)
    for i, (name, shp) in enumerate(specs.items()):
        bound = 1.0 / float(np.sqrt(shp[0] * shp[2] * shp[3]))
        params[name] = jax.random.uniform(keys[i], shp, jnp.float32, -bound, bound)
    # BN affine params (nontrivial values so their application is actually tested)
    params["gamma"] = jax.random.uniform(keys[-2], (6, cq), jnp.float32, 0.5, 1.5)
    params["beta"] = jax.random.uniform(keys[-1], (6, cq), jnp.float32, -0.5, 0.5)
    return params


# ---------------------------------------------------------------------------
# Pure-JAX reference (independent path: ConvTranspose2d as the vjp of Conv2d)
# ---------------------------------------------------------------------------
def inception_reference(x, params):
    def conv_t(y, wt, p):
        n_, _, h_, w_ = y.shape
        cq = wt.shape[1]

        def f(z):  # Conv2d(cq -> cin), stride 1, padding p, cross-correlation
            return jax.lax.conv_general_dilated(
                z, wt, window_strides=(1, 1), padding=[(p, p), (p, p)],
                dimension_numbers=("NCHW", "OIHW", "NCHW"))

        _, vjp = jax.vjp(f, jnp.zeros((n_, cq, h_, w_), y.dtype))
        (out,) = vjp(y)
        return out

    def bn_relu(y, i):
        g = params["gamma"][i].reshape(1, -1, 1, 1)
        b = params["beta"][i].reshape(1, -1, 1, 1)
        mu = jnp.mean(y, axis=(0, 2, 3), keepdims=True)
        var = jnp.mean((y - mu) ** 2, axis=(0, 2, 3), keepdims=True)
        return jnp.maximum((y - mu) / jnp.sqrt(var + _EPS) * g + b, 0.0)

    b1 = bn_relu(conv_t(x, params["wt1"], 0), 0)
    t2 = bn_relu(conv_t(x, params["wt2a"], 0), 1)
    b2 = bn_relu(conv_t(t2, params["wt2b"], 1), 2)
    t3 = bn_relu(conv_t(x, params["wt3a"], 0), 3)
    b3 = bn_relu(conv_t(t3, params["wt3b"], 2), 4)
    mp = jax.lax.reduce_window(x, -jnp.inf, jax.lax.max,
                               (1, 1, 3, 3), (1, 1, 1, 1),
                               [(0, 0), (0, 0), (1, 1), (1, 1)])
    b4 = bn_relu(conv_t(mp, params["wt4"], 0), 5)
    return jnp.concatenate([b1, b2, b3, b4], axis=1)


if __name__ == "__main__":
    # Small shapes consistent with the module; N*H*W = 128 -> lane-dense layout.
    N, IN_FEAT, OUT_FEAT, H, W = 2, 8, 16, 8, 8

    key = jax.random.PRNGKey(0)
    kx, kp = jax.random.split(key)
    x = jax.random.normal(kx, (N, IN_FEAT, H, W), jnp.float32)
    params = init_params(kp, IN_FEAT, OUT_FEAT)

    out = jax.block_until_ready(inception_forward(x, params))
    ref = inception_reference(x, params)

    assert out.shape == (N, OUT_FEAT, H, W)
    max_err = float(jnp.max(jnp.abs(out - ref)))
    assert jnp.allclose(out, ref, atol=2e-3, rtol=2e-3), f"mismatch vs reference: {max_err}"

    print("KERNEL_OK")
</pallas_src>

<mosaic_0001>
module attributes {stable_mosaic.version = 11 : i64} {
  func.func @_inception_kernel(%arg0: memref<2x128xi32, #tpu.memory_space<vmem>>, %arg1: memref<8x128xf32, #tpu.memory_space<vmem>>, %arg2: memref<16x8xf32, #tpu.memory_space<vmem>>, %arg3: memref<4x36xf32, #tpu.memory_space<vmem>>, %arg4: memref<4x100xf32, #tpu.memory_space<vmem>>, %arg5: memref<2x24x1xf32, #tpu.memory_space<vmem>>, %arg6: memref<16x128xf32, #tpu.memory_space<vmem>>) attributes {dimension_semantics = [], scalar_prefetch = 0 : i64, scratch_operands = 0 : i64, tpu.core_type = #tpu.core_type<tc>} {
    %c0 = arith.constant 0 : index
    %c0_0 = arith.constant 0 : index
    %0 = vector.load %arg1[%c0, %c0_0] : memref<8x128xf32, #tpu.memory_space<vmem>>, vector<8x128xf32>
    %c0_1 = arith.constant 0 : index
    %c0_2 = arith.constant 0 : index
    %1 = vector.load %arg0[%c0_1, %c0_2] : memref<2x128xi32, #tpu.memory_space<vmem>>, vector<2x128xi32>
    %2 = vector.extract_strided_slice %1 {offsets = [0, 0], sizes = [1, 128], strides = [1, 1]} : vector<2x128xi32> to vector<1x128xi32>
    %3 = vector.extract_strided_slice %1 {offsets = [1, 0], sizes = [1, 128], strides = [1, 1]} : vector<2x128xi32> to vector<1x128xi32>
    %c-2_i32 = arith.constant -2 : i32
    %4 = vector.broadcast %c-2_i32 : i32 to vector<1x128xi32>
    %5 = arith.addi %2, %4 : vector<1x128xi32>
    %c0_i32 = arith.constant 0 : i32
    %6 = vector.broadcast %c0_i32 : i32 to vector<1x128xi32>
    %7 = arith.cmpi sge, %5, %6 : vector<1x128xi32>
    %c-2_i32_3 = arith.constant -2 : i32
    %8 = vector.broadcast %c-2_i32_3 : i32 to vector<1x128xi32>
    %9 = arith.addi %2, %8 : vector<1x128xi32>
    %c8_i32 = arith.constant 8 : i32
    %10 = vector.broadcast %c8_i32 : i32 to vector<1x128xi32>
    %11 = arith.cmpi slt, %9, %10 : vector<1x128xi32>
    %12 = arith.andi %7, %11 : vector<1x128xi1>
    %c-1_i32 = arith.constant -1 : i32
    %13 = vector.broadcast %c-1_i32 : i32 to vector<1x128xi32>
    %14 = arith.addi %2, %13 : vector<1x128xi32>
    %c0_i32_4 = arith.constant 0 : i32
    %15 = vector.broadcast %c0_i32_4 : i32 to vector<1x128xi32>
    %16 = arith.cmpi sge, %14, %15 : vector<1x128xi32>
    %c-1_i32_5 = arith.constant -1 : i32
    %17 = vector.broadcast %c-1_i32_5 : i32 to vector<1x128xi32>
    %18 = arith.addi %2, %17 : vector<1x128xi32>
    %c8_i32_6 = arith.constant 8 : i32
    %19 = vector.broadcast %c8_i32_6 : i32 to vector<1x128xi32>
    %20 = arith.cmpi slt, %18, %19 : vector<1x128xi32>
    %21 = arith.andi %16, %20 : vector<1x128xi1>
    %c0_i32_7 = arith.constant 0 : i32
    %22 = vector.broadcast %c0_i32_7 : i32 to vector<1x128xi32>
    %23 = arith.addi %2, %22 : vector<1x128xi32>
    %c0_i32_8 = arith.constant 0 : i32
    %24 = vector.broadcast %c0_i32_8 : i32 to vector<1x128xi32>
    %25 = arith.cmpi sge, %23, %24 : vector<1x128xi32>
    %c0_i32_9 = arith.constant 0 : i32
    %26 = vector.broadcast %c0_i32_9 : i32 to vector<1x128xi32>
    %27 = arith.addi %2, %26 : vector<1x128xi32>
    %c8_i32_10 = arith.constant 8 : i32
    %28 = vector.broadcast %c8_i32_10 : i32 to vector<1x128xi32>
    %29 = arith.cmpi slt, %27, %28 : vector<1x128xi32>
    %30 = arith.andi %25, %29 : vector<1x128xi1>
    %c1_i32 = arith.constant 1 : i32
    %31 = vector.broadcast %c1_i32 : i32 to vector<1x128xi32>
    %32 = arith.addi %2, %31 : vector<1x128xi32>
    %c0_i32_11 = arith.constant 0 : i32
    %33 = vector.broadcast %c0_i32_11 : i32 to vector<1x128xi32>
    %34 = arith.cmpi sge, %32, %33 : vector<1x128xi32>
    %c1_i32_12 = arith.constant 1 : i32
    %35 = vector.broadcast %c1_i32_12 : i32 to vector<1x128xi32>
    %36 = arith.addi %2, %35 : vector<1x128xi32>
    %c8_i32_13 = arith.constant 8 : i32
    %37 = vector.broadcast %c8_i32_13 : i32 to vector<1x128xi32>
    %38 = arith.cmpi slt, %36, %37 : vector<1x128xi32>
    %39 = arith.andi %34, %38 : vector<1x128xi1>
    %c2_i32 = arith.constant 2 : i32
    %40 = vector.broadcast %c2_i32 : i32 to vector<1x128xi32>
    %41 = arith.addi %2, %40 : vector<1x128xi32>
    %c0_i32_14 = arith.constant 0 : i32
    %42 = vector.broadcast %c0_i32_14 : i32 to vector<1x128xi32>
    %43 = arith.cmpi sge, %41, %42 : vector<1x128xi32>
    %c2_i32_15 = arith.constant 2 : i32
    %44 = vector.broadcast %c2_i32_15 : i32 to vector<1x128xi32>
    %45 = arith.addi %2, %44 : vector<1x128xi32>
    %c8_i32_16 = arith.constant 8 : i32
    %46 = vector.broadcast %c8_i32_16 : i32 to vector<1x128xi32>
    %47 = arith.cmpi slt, %45, %46 : vector<1x128xi32>
    %48 = arith.andi %43, %47 : vector<1x128xi1>
    %c-2_i32_17 = arith.constant -2 : i32
    %49 = vector.broadcast %c-2_i32_17 : i32 to vector<1x128xi32>
    %50 = arith.addi %3, %49 : vector<1x128xi32>
    %c0_i32_18 = arith.constant 0 : i32
    %51 = vector.broadcast %c0_i32_18 : i32 to vector<1x128xi32>
    %52 = arith.cmpi sge, %50, %51 : vector<1x128xi32>
    %c-2_i32_19 = arith.constant -2 : i32
    %53 = vector.broadcast %c-2_i32_19 : i32 to vector<1x128xi32>
    %54 = arith.addi %3, %53 : vector<1x128xi32>
    %c8_i32_20 = arith.constant 8 : i32
    %55 = vector.broadcast %c8_i32_20 : i32 to vector<1x128xi32>
    %56 = arith.cmpi slt, %54, %55 : vector<1x128xi32>
    %57 = arith.andi %52, %56 : vector<1x128xi1>
    %c-1_i32_21 = arith.constant -1 : i32
    %58 = vector.broadcast %c-1_i32_21 : i32 to vector<1x128xi32>
    %59 = arith.addi %3, %58 : vector<1x128xi32>
    %c0_i32_22 = arith.constant 0 : i32
    %60 = vector.broadcast %c0_i32_22 : i32 to vector<1x128xi32>
    %61 = arith.cmpi sge, %59, %60 : vector<1x128xi32>
    %c-1_i32_23 = arith.constant -1 : i32
    %62 = vector.broadcast %c-1_i32_23 : i32 to vector<1x128xi32>
    %63 = arith.addi %3, %62 : vector<1x128xi32>
    %c8_i32_24 = arith.constant 8 : i32
    %64 = vector.broadcast %c8_i32_24 : i32 to vector<1x128xi32>
    %65 = arith.cmpi slt, %63, %64 : vector<1x128xi32>
    %66 = arith.andi %61, %65 : vector<1x128xi1>
    %c0_i32_25 = arith.constant 0 : i32
    %67 = vector.broadcast %c0_i32_25 : i32 to vector<1x128xi32>
    %68 = arith.addi %3, %67 : vector<1x128xi32>
    %c0_i32_26 = arith.constant 0 : i32
    %69 = vector.broadcast %c0_i32_26 : i32 to vector<1x128xi32>
    %70 = arith.cmpi sge, %68, %69 : vector<1x128xi32>
    %c0_i32_27 = arith.constant 0 : i32
    %71 = vector.broadcast %c0_i32_27 : i32 to vector<1x128xi32>
    %72 = arith.addi %3, %71 : vector<1x128xi32>
    %c8_i32_28 = arith.constant 8 : i32
    %73 = vector.broadcast %c8_i32_28 : i32 to vector<1x128xi32>
    %74 = arith.cmpi slt, %72, %73 : vector<1x128xi32>
    %75 = arith.andi %70, %74 : vector<1x128xi1>
    %c1_i32_29 = arith.constant 1 : i32
    %76 = vector.broadcast %c1_i32_29 : i32 to vector<1x128xi32>
    %77 = arith.addi %3, %76 : vector<1x128xi32>
    %c0_i32_30 = arith.constant 0 : i32
    %78 = vector.broadcast %c0_i32_30 : i32 to vector<1x128xi32>
    %79 = arith.cmpi sge, %77, %78 : vector<1x128xi32>
    %c1_i32_31 = arith.constant 1 : i32
    %80 = vector.broadcast %c1_i32_31 : i32 to vector<1x128xi32>
    %81 = arith.addi %3, %80 : vector<1x128xi32>
    %c8_i32_32 = arith.constant 8 : i32
    %82 = vector.broadcast %c8_i32_32 : i32 to vector<1x128xi32>
    %83 = arith.cmpi slt, %81, %82 : vector<1x128xi32>
    %84 = arith.andi %79, %83 : vector<1x128xi1>
    %c2_i32_33 = arith.constant 2 : i32
    %85 = vector.broadcast %c2_i32_33 : i32 to vector<1x128xi32>
    %86 = arith.addi %3, %85 : vector<1x128xi32>
    %c0_i32_34 = arith.constant 0 : i32
    %87 = vector.broadcast %c0_i32_34 : i32 to vector<1x128xi32>
    %88 = arith.cmpi sge, %86, %87 : vector<1x128xi32>
    %c2_i32_35 = arith.constant 2 : i32
    %89 = vector.broadcast %c2_i32_35 : i32 to vector<1x128xi32>
    %90 = arith.addi %3, %89 : vector<1x128xi32>
    %c8_i32_36 = arith.constant 8 : i32
    %91 = vector.broadcast %c8_i32_36 : i32 to vector<1x128xi32>
    %92 = arith.cmpi slt, %90, %91 : vector<1x128xi32>
    %93 = arith.andi %88, %92 : vector<1x128xi1>
    %c0_37 = arith.constant 0 : index
    %c0_38 = arith.constant 0 : index
    %c0_39 = arith.constant 0 : index
    %94 = vector.load %arg5[%c0_37, %c0_38, %c0_39] : memref<2x24x1xf32, #tpu.memory_space<vmem>>, vector<1x24x1xf32>
    %95 = vector.shape_cast %94 : vector<1x24x1xf32> to vector<24x1xf32>
    %c1 = arith.constant 1 : index
    %c0_40 = arith.constant 0 : index
    %c0_41 = arith.constant 0 : index
    %96 = vector.load %arg5[%c1, %c0_40, %c0_41] : memref<2x24x1xf32, #tpu.memory_space<vmem>>, vector<1x24x1xf32>
    %97 = vector.shape_cast %96 : vector<1x24x1xf32> to vector<24x1xf32>
    %c0_42 = arith.constant 0 : index
    %c0_43 = arith.constant 0 : index
    %98 = vector.load %arg2[%c0_42, %c0_43] : memref<16x8xf32, #tpu.memory_space<vmem>>, vector<16x8xf32>
    %99 = vector.extract_strided_slice %98 {offsets = [0, 0], sizes = [12, 8], strides = [1, 1]} : vector<16x8xf32> to vector<12x8xf32>
    %cst = arith.constant dense<0.000000e+00> : vector<12x128xf32>
    %100 = tpu.matmul %99, %0, %cst {dimension_numbers = #tpu.dot_dimension_numbers<[1], [0], [0], [1], [0, 0, 1, 1], [], []>} : vector<12x8xf32>, vector<8x128xf32>, vector<12x128xf32> -> vector<12x128xf32>
    %101 = vector.extract_strided_slice %100 {offsets = [0, 0], sizes = [4, 128], strides = [1, 1]} : vector<12x128xf32> to vector<4x128xf32>
    %cst_44 = arith.constant dense<0.000000e+00> : vector<4xf32>
    %102 = vector.multi_reduction <add>, %101, %cst_44 [1] : vector<4x128xf32> to vector<4xf32>
    %103 = vector.shape_cast %102 : vector<4xf32> to vector<4x1xf32>
    %cst_45 = arith.constant 7.812500e-03 : f32
    %104 = vector.broadcast %cst_45 : f32 to vector<4x1xf32>
    %105 = arith.mulf %103, %104 : vector<4x1xf32>
    %106 = vector.broadcast %105 : vector<4x1xf32> to vector<4x128xf32>
    %107 = arith.subf %101, %106 : vector<4x128xf32>
    %108 = arith.mulf %107, %107 : vector<4x128xf32>
    %cst_46 = arith.constant dense<0.000000e+00> : vector<4xf32>
    %109 = vector.multi_reduction <add>, %108, %cst_46 [1] : vector<4x128xf32> to vector<4xf32>
    %110 = vector.shape_cast %109 : vector<4xf32> to vector<4x1xf32>
    %cst_47 = arith.constant 7.812500e-03 : f32
    %111 = vector.broadcast %cst_47 : f32 to vector<4x1xf32>
    %112 = arith.mulf %110, %111 : vector<4x1xf32>
    %113 = vector.extract_strided_slice %95 {offsets = [0, 0], sizes = [4, 1], strides = [1, 1]} : vector<24x1xf32> to vector<4x1xf32>
    %cst_48 = arith.constant 9.99999974E-6 : f32
    %114 = vector.broadcast %cst_48 : f32 to vector<4x1xf32>
    %115 = arith.addf %112, %114 : vector<4x1xf32>
    %116 = math.rsqrt %115 : vector<4x1xf32>
    %117 = arith.mulf %113, %116 : vector<4x1xf32>
    %118 = vector.broadcast %117 : vector<4x1xf32> to vector<4x128xf32>
    %119 = arith.mulf %107, %118 : vector<4x128xf32>
    %120 = vector.extract_strided_slice %97 {offsets = [0, 0], sizes = [4, 1], strides = [1, 1]} : vector<24x1xf32> to vector<4x1xf32>
    %121 = vector.broadcast %120 : vector<4x1xf32> to vector<4x128xf32>
    %122 = arith.addf %119, %121 : vector<4x128xf32>
    %cst_49 = arith.constant 0.000000e+00 : f32
    %123 = vector.broadcast %cst_49 : f32 to vector<4x128xf32>
    %124 = arith.maximumf %122, %123 : vector<4x128xf32>
    %125 = vector.extract_strided_slice %100 {offsets = [4, 0], sizes = [4, 128], strides = [1, 1]} : vector<12x128xf32> to vector<4x128xf32>
    %cst_50 = arith.constant dense<0.000000e+00> : vector<4xf32>
    %126 = vector.multi_reduction <add>, %125, %cst_50 [1] : vector<4x128xf32> to vector<4xf32>
    %127 = vector.shape_cast %126 : vector<4xf32> to vector<4x1xf32>
    %cst_51 = arith.constant 7.812500e-03 : f32
    %128 = vector.broadcast %cst_51 : f32 to vector<4x1xf32>
    %129 = arith.mulf %127, %128 : vector<4x1xf32>
    %130 = vector.broadcast %129 : vector<4x1xf32> to vector<4x128xf32>
    %131 = arith.subf %125, %130 : vector<4x128xf32>
    %132 = arith.mulf %131, %131 : vector<4x128xf32>
    %cst_52 = arith.constant dense<0.000000e+00> : vector<4xf32>
    %133 = vector.multi_reduction <add>, %132, %cst_52 [1] : vector<4x128xf32> to vector<4xf32>
    %134 = vector.shape_cast %133 : vector<4xf32> to vector<4x1xf32>
    %cst_53 = arith.constant 7.812500e-03 : f32
    %135 = vector.broadcast %cst_53 : f32 to vector<4x1xf32>
    %136 = arith.mulf %134, %135 : vector<4x1xf32>
    %137 = vector.extract_strided_slice %95 {offsets = [4, 0], sizes = [4, 1], strides = [1, 1]} : vector<24x1xf32> to vector<4x1xf32>
    %cst_54 = arith.constant 9.99999974E-6 : f32
    %138 = vector.broadcast %cst_54 : f32 to vector<4x1xf32>
    %139 = arith.addf %136, %138 : vector<4x1xf32>
    %140 = math.rsqrt %139 : vector<4x1xf32>
    %141 = arith.mulf %137, %140 : vector<4x1xf32>
    %142 = vector.broadcast %141 : vector<4x1xf32> to vector<4x128xf32>
    %143 = arith.mulf %131, %142 : vector<4x128xf32>
    %144 = vector.extract_strided_slice %97 {offsets = [4, 0], sizes = [4, 1], strides = [1, 1]} : vector<24x1xf32> to vector<4x1xf32>
    %145 = vector.broadcast %144 : vector<4x1xf32> to vector<4x128xf32>
    %146 = arith.addf %143, %145 : vector<4x128xf32>
    %cst_55 = arith.constant 0.000000e+00 : f32
    %147 = vector.broadcast %cst_55 : f32 to vector<4x128xf32>
    %148 = arith.maximumf %146, %147 : vector<4x128xf32>
    %149 = vector.extract_strided_slice %100 {offsets = [8, 0], sizes = [4, 128], strides = [1, 1]} : vector<12x128xf32> to vector<4x128xf32>
    %cst_56 = arith.constant dense<0.000000e+00> : vector<4xf32>
    %150 = vector.multi_reduction <add>, %149, %cst_56 [1] : vector<4x128xf32> to vector<4xf32>
    %151 = vector.shape_cast %150 : vector<4xf32> to vector<4x1xf32>
    %cst_57 = arith.constant 7.812500e-03 : f32
    %152 = vector.broadcast %cst_57 : f32 to vector<4x1xf32>
    %153 = arith.mulf %151, %152 : vector<4x1xf32>
    %154 = vector.broadcast %153 : vector<4x1xf32> to vector<4x128xf32>
    %155 = arith.subf %149, %154 : vector<4x128xf32>
    %156 = arith.mulf %155, %155 : vector<4x128xf32>
    %cst_58 = arith.constant dense<0.000000e+00> : vector<4xf32>
    %157 = vector.multi_reduction <add>, %156, %cst_58 [1] : vector<4x128xf32> to vector<4xf32>
    %158 = vector.shape_cast %157 : vector<4xf32> to vector<4x1xf32>
    %cst_59 = arith.constant 7.812500e-03 : f32
    %159 = vector.broadcast %cst_59 : f32 to vector<4x1xf32>
    %160 = arith.mulf %158, %159 : vector<4x1xf32>
    %161 = vector.extract_strided_slice %95 {offsets = [12, 0], sizes = [4, 1], strides = [1, 1]} : vector<24x1xf32> to vector<4x1xf32>
    %cst_60 = arith.constant 9.99999974E-6 : f32
    %162 = vector.broadcast %cst_60 : f32 to vector<4x1xf32>
    %163 = arith.addf %160, %162 : vector<4x1xf32>
    %164 = math.rsqrt %163 : vector<4x1xf32>
    %165 = arith.mulf %161, %164 : vector<4x1xf32>
    %166 = vector.broadcast %165 : vector<4x1xf32> to vector<4x128xf32>
    %167 = arith.mulf %155, %166 : vector<4x128xf32>
    %168 = vector.extract_strided_slice %97 {offsets = [12, 0], sizes = [4, 1], strides = [1, 1]} : vector<24x1xf32> to vector<4x1xf32>
    %169 = vector.broadcast %168 : vector<4x1xf32> to vector<4x128xf32>
    %170 = arith.addf %167, %169 : vector<4x128xf32>
    %cst_61 = arith.constant 0.000000e+00 : f32
    %171 = vector.broadcast %cst_61 : f32 to vector<4x128xf32>
    %172 = arith.maximumf %170, %171 : vector<4x128xf32>
    %c9_i32 = arith.constant 9 : i32
    %173 = tpu.dynamic_rotate %148 by %c9_i32 dim 1 : vector<4x128xf32>, i32 -> vector<4x128xf32>
    %174 = arith.andi %21, %66 : vector<1x128xi1>
    %cst_62 = arith.constant 0.000000e+00 : f32
    %175 = vector.shape_cast %174 : vector<1x128xi1> to vector<1x128xi1>
    %176 = vector.broadcast %175 : vector<1x128xi1> to vector<4x128xi1>
    %177 = vector.broadcast %cst_62 : f32 to vector<4x128xf32>
    %178 = arith.select %176, %173, %177 : vector<4x128xi1>, vector<4x128xf32>
    %c8_i32_63 = arith.constant 8 : i32
    %179 = tpu.dynamic_rotate %148 by %c8_i32_63 dim 1 : vector<4x128xf32>, i32 -> vector<4x128xf32>
    %180 = arith.andi %21, %75 : vector<1x128xi1>
    %cst_64 = arith.constant 0.000000e+00 : f32
    %181 = vector.shape_cast %180 : vector<1x128xi1> to vector<1x128xi1>
    %182 = vector.broadcast %181 : vector<1x128xi1> to vector<4x128xi1>
    %183 = vector.broadcast %cst_64 : f32 to vector<4x128xf32>
    %184 = arith.select %182, %179, %183 : vector<4x128xi1>, vector<4x128xf32>
    %c7_i32 = arith.constant 7 : i32
    %185 = tpu.dynamic_rotate %148 by %c7_i32 dim 1 : vector<4x128xf32>, i32 -> vector<4x128xf32>
    %186 = arith.andi %21, %84 : vector<1x128xi1>
    %cst_65 = arith.constant 0.000000e+00 : f32
    %187 = vector.shape_cast %186 : vector<1x128xi1> to vector<1x128xi1>
    %188 = vector.broadcast %187 : vector<1x128xi1> to vector<4x128xi1>
    %189 = vector.broadcast %cst_65 : f32 to vector<4x128xf32>
    %190 = arith.select %188, %185, %189 : vector<4x128xi1>, vector<4x128xf32>
    %c1_i32_66 = arith.constant 1 : i32
    %191 = tpu.dynamic_rotate %148 by %c1_i32_66 dim 1 : vector<4x128xf32>, i32 -> vector<4x128xf32>
    %192 = arith.andi %30, %66 : vector<1x128xi1>
    %cst_67 = arith.constant 0.000000e+00 : f32
    %193 = vector.shape_cast %192 : vector<1x128xi1> to vector<1x128xi1>
    %194 = vector.broadcast %193 : vector<1x128xi1> to vector<4x128xi1>
    %195 = vector.broadcast %cst_67 : f32 to vector<4x128xf32>
    %196 = arith.select %194, %191, %195 : vector<4x128xi1>, vector<4x128xf32>
    %c127_i32 = arith.constant 127 : i32
    %197 = tpu.dynamic_rotate %148 by %c127_i32 dim 1 : vector<4x128xf32>, i32 -> vector<4x128xf32>
    %198 = arith.andi %30, %84 : vector<1x128xi1>
    %cst_68 = arith.constant 0.000000e+00 : f32
    %199 = vector.shape_cast %198 : vector<1x128xi1> to vector<1x128xi1>
    %200 = vector.broadcast %199 : vector<1x128xi1> to vector<4x128xi1>
    %201 = vector.broadcast %cst_68 : f32 to vector<4x128xf32>
    %202 = arith.select %200, %197, %201 : vector<4x128xi1>, vector<4x128xf32>
    %c121_i32 = arith.constant 121 : i32
    %203 = tpu.dynamic_rotate %148 by %c121_i32 dim 1 : vector<4x128xf32>, i32 -> vector<4x128xf32>
    %204 = arith.andi %39, %66 : vector<1x128xi1>
    %cst_69 = arith.constant 0.000000e+00 : f32
    %205 = vector.shape_cast %204 : vector<1x128xi1> to vector<1x128xi1>
    %206 = vector.broadcast %205 : vector<1x128xi1> to vector<4x128xi1>
    %207 = vector.broadcast %cst_69 : f32 to vector<4x128xf32>
    %208 = arith.select %206, %203, %207 : vector<4x128xi1>, vector<4x128xf32>
    %c120_i32 = arith.constant 120 : i32
    %209 = tpu.dynamic_rotate %148 by %c120_i32 dim 1 : vector<4x128xf32>, i32 -> vector<4x128xf32>
    %210 = arith.andi %39, %75 : vector<1x128xi1>
    %cst_70 = arith.constant 0.000000e+00 : f32
    %211 = vector.shape_cast %210 : vector<1x128xi1> to vector<1x128xi1>
    %212 = vector.broadcast %211 : vector<1x128xi1> to vector<4x128xi1>
    %213 = vector.broadcast %cst_70 : f32 to vector<4x128xf32>
    %214 = arith.select %212, %209, %213 : vector<4x128xi1>, vector<4x128xf32>
    %c119_i32 = arith.constant 119 : i32
    %215 = tpu.dynamic_rotate %148 by %c119_i32 dim 1 : vector<4x128xf32>, i32 -> vector<4x128xf32>
    %216 = arith.andi %39, %84 : vector<1x128xi1>
    %cst_71 = arith.constant 0.000000e+00 : f32
    %217 = vector.shape_cast %216 : vector<1x128xi1> to vector<1x128xi1>
    %218 = vector.broadcast %217 : vector<1x128xi1> to vector<4x128xi1>
    %219 = vector.broadcast %cst_71 : f32 to vector<4x128xf32>
    %220 = arith.select %218, %215, %219 : vector<4x128xi1>, vector<4x128xf32>
    %c0_72 = arith.constant 0 : index
    %c0_73 = arith.constant 0 : index
    %221 = vector.load %arg3[%c0_72, %c0_73] : memref<4x36xf32, #tpu.memory_space<vmem>>, vector<4x36xf32>
    %222 = tpu.concatenate %178, %184, %190, %196, %148, %202, %208, %214, %220 in 0 : vector<4x128xf32>, vector<4x128xf32>, vector<4x128xf32>, vector<4x128xf32>, vector<4x128xf32>, vector<4x128xf32>, vector<4x128xf32>, vector<4x128xf32>, vector<4x128xf32> -> vector<36x128xf32>
    %cst_74 = arith.constant dense<0.000000e+00> : vector<4x128xf32>
    %223 = tpu.matmul %221, %222, %cst_74 {dimension_numbers = #tpu.dot_dimension_numbers<[1], [0], [0], [1], [0, 0, 1, 1], [], []>} : vector<4x36xf32>, vector<36x128xf32>, vector<4x128xf32> -> vector<4x128xf32>
    %cst_75 = arith.constant dense<0.000000e+00> : vector<4xf32>
    %224 = vector.multi_reduction <add>, %223, %cst_75 [1] : vector<4x128xf32> to vector<4xf32>
    %225 = vector.shape_cast %224 : vector<4xf32> to vector<4x1xf32>
    %cst_76 = arith.constant 7.812500e-03 : f32
    %226 = vector.broadcast %cst_76 : f32 to vector<4x1xf32>
    %227 = arith.mulf %225, %226 : vector<4x1xf32>
    %228 = vector.broadcast %227 : vector<4x1xf32> to vector<4x128xf32>
    %229 = arith.subf %223, %228 : vector<4x128xf32>
    %230 = arith.mulf %229, %229 : vector<4x128xf32>
    %cst_77 = arith.constant dense<0.000000e+00> : vector<4xf32>
    %231 = vector.multi_reduction <add>, %230, %cst_77 [1] : vector<4x128xf32> to vector<4xf32>
    %232 = vector.shape_cast %231 : vector<4xf32> to vector<4x1xf32>
    %cst_78 = arith.constant 7.812500e-03 : f32
    %233 = vector.broadcast %cst_78 : f32 to vector<4x1xf32>
    %234 = arith.mulf %232, %233 : vector<4x1xf32>
    %235 = vector.extract_strided_slice %95 {offsets = [8, 0], sizes = [4, 1], strides = [1, 1]} : vector<24x1xf32> to vector<4x1xf32>
    %cst_79 = arith.constant 9.99999974E-6 : f32
    %236 = vector.broadcast %cst_79 : f32 to vector<4x1xf32>
    %237 = arith.addf %234, %236 : vector<4x1xf32>
    %238 = math.rsqrt %237 : vector<4x1xf32>
    %239 = arith.mulf %235, %238 : vector<4x1xf32>
    %240 = vector.broadcast %239 : vector<4x1xf32> to vector<4x128xf32>
    %241 = arith.mulf %229, %240 : vector<4x128xf32>
    %242 = vector.extract_strided_slice %97 {offsets = [8, 0], sizes = [4, 1], strides = [1, 1]} : vector<24x1xf32> to vector<4x1xf32>
    %243 = vector.broadcast %242 : vector<4x1xf32> to vector<4x128xf32>
    %244 = arith.addf %241, %243 : vector<4x128xf32>
    %cst_80 = arith.constant 0.000000e+00 : f32
    %245 = vector.broadcast %cst_80 : f32 to vector<4x128xf32>
    %246 = arith.maximumf %244, %245 : vector<4x128xf32>
    %c18_i32 = arith.constant 18 : i32
    %247 = tpu.dynamic_rotate %172 by %c18_i32 dim 1 : vector<4x128xf32>, i32 -> vector<4x128xf32>
    %248 = arith.andi %12, %57 : vector<1x128xi1>
    %cst_81 = arith.constant 0.000000e+00 : f32
    %249 = vector.shape_cast %248 : vector<1x128xi1> to vector<1x128xi1>
    %250 = vector.broadcast %249 : vector<1x128xi1> to vector<4x128xi1>
    %251 = vector.broadcast %cst_81 : f32 to vector<4x128xf32>
    %252 = arith.select %250, %247, %251 : vector<4x128xi1>, vector<4x128xf32>
    %c17_i32 = arith.constant 17 : i32
    %253 = tpu.dynamic_rotate %172 by %c17_i32 dim 1 : vector<4x128xf32>, i32 -> vector<4x128xf32>
    %254 = arith.andi %12, %66 : vector<1x128xi1>
    %cst_82 = arith.constant 0.000000e+00 : f32
    %255 = vector.shape_cast %254 : vector<1x128xi1> to vector<1x128xi1>
    %256 = vector.broadcast %255 : vector<1x128xi1> to vector<4x128xi1>
    %257 = vector.broadcast %cst_82 : f32 to vector<4x128xf32>
    %258 = arith.select %256, %253, %257 : vector<4x128xi1>, vector<4x128xf32>
    %c16_i32 = arith.constant 16 : i32
    %259 = tpu.dynamic_rotate %172 by %c16_i32 dim 1 : vector<4x128xf32>, i32 -> vector<4x128xf32>
    %260 = arith.andi %12, %75 : vector<1x128xi1>
    %cst_83 = arith.constant 0.000000e+00 : f32
    %261 = vector.shape_cast %260 : vector<1x128xi1> to vector<1x128xi1>
    %262 = vector.broadcast %261 : vector<1x128xi1> to vector<4x128xi1>
    %263 = vector.broadcast %cst_83 : f32 to vector<4x128xf32>
    %264 = arith.select %262, %259, %263 : vector<4x128xi1>, vector<4x128xf32>
    %c15_i32 = arith.constant 15 : i32
    %265 = tpu.dynamic_rotate %172 by %c15_i32 dim 1 : vector<4x128xf32>, i32 -> vector<4x128xf32>
    %266 = arith.andi %12, %84 : vector<1x128xi1>
    %cst_84 = arith.constant 0.000000e+00 : f32
    %267 = vector.shape_cast %266 : vector<1x128xi1> to vector<1x128xi1>
    %268 = vector.broadcast %267 : vector<1x128xi1> to vector<4x128xi1>
    %269 = vector.broadcast %cst_84 : f32 to vector<4x128xf32>
    %270 = arith.select %268, %265, %269 : vector<4x128xi1>, vector<4x128xf32>
    %c14_i32 = arith.constant 14 : i32
    %271 = tpu.dynamic_rotate %172 by %c14_i32 dim 1 : vector<4x128xf32>, i32 -> vector<4x128xf32>
    %272 = arith.andi %12, %93 : vector<1x128xi1>
    %cst_85 = arith.constant 0.000000e+00 : f32
    %273 = vector.shape_cast %272 : vector<1x128xi1> to vector<1x128xi1>
    %274 = vector.broadcast %273 : vector<1x128xi1> to vector<4x128xi1>
    %275 = vector.broadcast %cst_85 : f32 to vector<4x128xf32>
    %276 = arith.select %274, %271, %275 : vector<4x128xi1>, vector<4x128xf32>
    %c10_i32 = arith.constant 10 : i32
    %277 = tpu.dynamic_rotate %172 by %c10_i32 dim 1 : vector<4x128xf32>, i32 -> vector<4x128xf32>
    %278 = arith.andi %21, %57 : vector<1x128xi1>
    %cst_86 = arith.constant 0.000000e+00 : f32
    %279 = vector.shape_cast %278 : vector<1x128xi1> to vector<1x128xi1>
    %280 = vector.broadcast %279 : vector<1x128xi1> to vector<4x128xi1>
    %281 = vector.broadcast %cst_86 : f32 to vector<4x128xf32>
    %282 = arith.select %280, %277, %281 : vector<4x128xi1>, vector<4x128xf32>
    %c9_i32_87 = arith.constant 9 : i32
    %283 = tpu.dynamic_rotate %172 by %c9_i32_87 dim 1 : vector<4x128xf32>, i32 -> vector<4x128xf32>
    %284 = arith.andi %21, %66 : vector<1x128xi1>
    %cst_88 = arith.constant 0.000000e+00 : f32
    %285 = vector.shape_cast %284 : vector<1x128xi1> to vector<1x128xi1>
    %286 = vector.broadcast %285 : vector<1x128xi1> to vector<4x128xi1>
    %287 = vector.broadcast %cst_88 : f32 to vector<4x128xf32>
    %288 = arith.select %286, %283, %287 : vector<4x128xi1>, vector<4x128xf32>
    %c8_i32_89 = arith.constant 8 : i32
    %289 = tpu.dynamic_rotate %172 by %c8_i32_89 dim 1 : vector<4x128xf32>, i32 -> vector<4x128xf32>
    %290 = arith.andi %21, %75 : vector<1x128xi1>
    %cst_90 = arith.constant 0.000000e+00 : f32
    %291 = vector.shape_cast %290 : vector<1x128xi1> to vector<1x128xi1>
    %292 = vector.broadcast %291 : vector<1x128xi1> to vector<4x128xi1>
    %293 = vector.broadcast %cst_90 : f32 to vector<4x128xf32>
    %294 = arith.select %292, %289, %293 : vector<4x128xi1>, vector<4x128xf32>
    %c7_i32_91 = arith.constant 7 : i32
    %295 = tpu.dynamic_rotate %172 by %c7_i32_91 dim 1 : vector<4x128xf32>, i32 -> vector<4x128xf32>
    %296 = arith.andi %21, %84 : vector<1x128xi1>
    %cst_92 = arith.constant 0.000000e+00 : f32
    %297 = vector.shape_cast %296 : vector<1x128xi1> to vector<1x128xi1>
    %298 = vector.broadcast %297 : vector<1x128xi1> to vector<4x128xi1>
    %299 = vector.broadcast %cst_92 : f32 to vector<4x128xf32>
    %300 = arith.select %298, %295, %299 : vector<4x128xi1>, vector<4x128xf32>
    %c6_i32 = arith.constant 6 : i32
    %301 = tpu.dynamic_rotate %172 by %c6_i32 dim 1 : vector<4x128xf32>, i32 -> vector<4x128xf32>
    %302 = arith.andi %21, %93 : vector<1x128xi1>
    %cst_93 = arith.constant 0.000000e+00 : f32
    %303 = vector.shape_cast %302 : vector<1x128xi1> to vector<1x128xi1>
    %304 = vector.broadcast %303 : vector<1x128xi1> to vector<4x128xi1>
    %305 = vector.broadcast %cst_93 : f32 to vector<4x128xf32>
    %306 = arith.select %304, %301, %305 : vector<4x128xi1>, vector<4x128xf32>
    %c2_i32_94 = arith.constant 2 : i32
    %307 = tpu.dynamic_rotate %172 by %c2_i32_94 dim 1 : vector<4x128xf32>, i32 -> vector<4x128xf32>
    %308 = arith.andi %30, %57 : vector<1x128xi1>
    %cst_95 = arith.constant 0.000000e+00 : f32
    %309 = vector.shape_cast %308 : vector<1x128xi1> to vector<1x128xi1>
    %310 = vector.broadcast %309 : vector<1x128xi1> to vector<4x128xi1>
    %311 = vector.broadcast %cst_95 : f32 to vector<4x128xf32>
    %312 = arith.select %310, %307, %311 : vector<4x128xi1>, vector<4x128xf32>
    %c1_i32_96 = arith.constant 1 : i32
    %313 = tpu.dynamic_rotate %172 by %c1_i32_96 dim 1 : vector<4x128xf32>, i32 -> vector<4x128xf32>
    %314 = arith.andi %30, %66 : vector<1x128xi1>
    %cst_97 = arith.constant 0.000000e+00 : f32
    %315 = vector.shape_cast %314 : vector<1x128xi1> to vector<1x128xi1>
    %316 = vector.broadcast %315 : vector<1x128xi1> to vector<4x128xi1>
    %317 = vector.broadcast %cst_97 : f32 to vector<4x128xf32>
    %318 = arith.select %316, %313, %317 : vector<4x128xi1>, vector<4x128xf32>
    %c127_i32_98 = arith.constant 127 : i32
    %319 = tpu.dynamic_rotate %172 by %c127_i32_98 dim 1 : vector<4x128xf32>, i32 -> vector<4x128xf32>
    %320 = arith.andi %30, %84 : vector<1x128xi1>
    %cst_99 = arith.constant 0.000000e+00 : f32
    %321 = vector.shape_cast %320 : vector<1x128xi1> to vector<1x128xi1>
    %322 = vector.broadcast %321 : vector<1x128xi1> to vector<4x128xi1>
    %323 = vector.broadcast %cst_99 : f32 to vector<4x128xf32>
    %324 = arith.select %322, %319, %323 : vector<4x128xi1>, vector<4x128xf32>
    %c126_i32 = arith.constant 126 : i32
    %325 = tpu.dynamic_rotate %172 by %c126_i32 dim 1 : vector<4x128xf32>, i32 -> vector<4x128xf32>
    %326 = arith.andi %30, %93 : vector<1x128xi1>
    %cst_100 = arith.constant 0.000000e+00 : f32
    %327 = vector.shape_cast %326 : vector<1x128xi1> to vector<1x128xi1>
    %328 = vector.broadcast %327 : vector<1x128xi1> to vector<4x128xi1>
    %329 = vector.broadcast %cst_100 : f32 to vector<4x128xf32>
    %330 = arith.select %328, %325, %329 : vector<4x128xi1>, vector<4x128xf32>
    %c122_i32 = arith.constant 122 : i32
    %331 = tpu.dynamic_rotate %172 by %c122_i32 dim 1 : vector<4x128xf32>, i32 -> vector<4x128xf32>
    %332 = arith.andi %39, %57 : vector<1x128xi1>
    %cst_101 = arith.constant 0.000000e+00 : f32
    %333 = vector.shape_cast %332 : vector<1x128xi1> to vector<1x128xi1>
    %334 = vector.broadcast %333 : vector<1x128xi1> to vector<4x128xi1>
    %335 = vector.broadcast %cst_101 : f32 to vector<4x128xf32>
    %336 = arith.select %334, %331, %335 : vector<4x128xi1>, vector<4x128xf32>
    %c121_i32_102 = arith.constant 121 : i32
    %337 = tpu.dynamic_rotate %172 by %c121_i32_102 dim 1 : vector<4x128xf32>, i32 -> vector<4x128xf32>
    %338 = arith.andi %39, %66 : vector<1x128xi1>
    %cst_103 = arith.constant 0.000000e+00 : f32
    %339 = vector.shape_cast %338 : vector<1x128xi1> to vector<1x128xi1>
    %340 = vector.broadcast %339 : vector<1x128xi1> to vector<4x128xi1>
    %341 = vector.broadcast %cst_103 : f32 to vector<4x128xf32>
    %342 = arith.select %340, %337, %341 : vector<4x128xi1>, vector<4x128xf32>
    %c120_i32_104 = arith.constant 120 : i32
    %343 = tpu.dynamic_rotate %172 by %c120_i32_104 dim 1 : vector<4x128xf32>, i32 -> vector<4x128xf32>
    %344 = arith.andi %39, %75 : vector<1x128xi1>
    %cst_105 = arith.constant 0.000000e+00 : f32
    %345 = vector.shape_cast %344 : vector<1x128xi1> to vector<1x128xi1>
    %346 = vector.broadcast %345 : vector<1x128xi1> to vector<4x128xi1>
    %347 = vector.broadcast %cst_105 : f32 to vector<4x128xf32>
    %348 = arith.select %346, %343, %347 : vector<4x128xi1>, vector<4x128xf32>
    %c119_i32_106 = arith.constant 119 : i32
    %349 = tpu.dynamic_rotate %172 by %c119_i32_106 dim 1 : vector<4x128xf32>, i32 -> vector<4x128xf32>
    %350 = arith.andi %39, %84 : vector<1x128xi1>
    %cst_107 = arith.constant 0.000000e+00 : f32
    %351 = vector.shape_cast %350 : vector<1x128xi1> to vector<1x128xi1>
    %352 = vector.broadcast %351 : vector<1x128xi1> to vector<4x128xi1>
    %353 = vector.broadcast %cst_107 : f32 to vector<4x128xf32>
    %354 = arith.select %352, %349, %353 : vector<4x128xi1>, vector<4x128xf32>
    %c118_i32 = arith.constant 118 : i32
    %355 = tpu.dynamic_rotate %172 by %c118_i32 dim 1 : vector<4x128xf32>, i32 -> vector<4x128xf32>
    %356 = arith.andi %39, %93 : vector<1x128xi1>
    %cst_108 = arith.constant 0.000000e+00 : f32
    %357 = vector.shape_cast %356 : vector<1x128xi1> to vector<1x128xi1>
    %358 = vector.broadcast %357 : vector<1x128xi1> to vector<4x128xi1>
    %359 = vector.broadcast %cst_108 : f32 to vector<4x128xf32>
    %360 = arith.select %358, %355, %359 : vector<4x128xi1>, vector<4x128xf32>
    %c114_i32 = arith.constant 114 : i32
    %361 = tpu.dynamic_rotate %172 by %c114_i32 dim 1 : vector<4x128xf32>, i32 -> vector<4x128xf32>
    %362 = arith.andi %48, %57 : vector<1x128xi1>
    %cst_109 = arith.constant 0.000000e+00 : f32
    %363 = vector.shape_cast %362 : vector<1x128xi1> to vector<1x128xi1>
    %364 = vector.broadcast %363 : vector<1x128xi1> to vector<4x128xi1>
    %365 = vector.broadcast %cst_109 : f32 to vector<4x128xf32>
    %366 = arith.select %364, %361, %365 : vector<4x128xi1>, vector<4x128xf32>
    %c113_i32 = arith.constant 113 : i32
    %367 = tpu.dynamic_rotate %172 by %c113_i32 dim 1 : vector<4x128xf32>, i32 -> vector<4x128xf32>
    %368 = arith.andi %48, %66 : vector<1x128xi1>
    %cst_110 = arith.constant 0.000000e+00 : f32
    %369 = vector.shape_cast %368 : vector<1x128xi1> to vector<1x128xi1>
    %370 = vector.broadcast %369 : vector<1x128xi1> to vector<4x128xi1>
    %371 = vector.broadcast %cst_110 : f32 to vector<4x128xf32>
    %372 = arith.select %370, %367, %371 : vector<4x128xi1>, vector<4x128xf32>
    %c112_i32 = arith.constant 112 : i32
    %373 = tpu.dynamic_rotate %172 by %c112_i32 dim 1 : vector<4x128xf32>, i32 -> vector<4x128xf32>
    %374 = arith.andi %48, %75 : vector<1x128xi1>
    %cst_111 = arith.constant 0.000000e+00 : f32
    %375 = vector.shape_cast %374 : vector<1x128xi1> to vector<1x128xi1>
    %376 = vector.broadcast %375 : vector<1x128xi1> to vector<4x128xi1>
    %377 = vector.broadcast %cst_111 : f32 to vector<4x128xf32>
    %378 = arith.select %376, %373, %377 : vector<4x128xi1>, vector<4x128xf32>
    %c111_i32 = arith.constant 111 : i32
    %379 = tpu.dynamic_rotate %172 by %c111_i32 dim 1 : vector<4x128xf32>, i32 -> vector<4x128xf32>
    %380 = arith.andi %48, %84 : vector<1x128xi1>
    %cst_112 = arith.constant 0.000000e+00 : f32
    %381 = vector.shape_cast %380 : vector<1x128xi1> to vector<1x128xi1>
    %382 = vector.broadcast %381 : vector<1x128xi1> to vector<4x128xi1>
    %383 = vector.broadcast %cst_112 : f32 to vector<4x128xf32>
    %384 = arith.select %382, %379, %383 : vector<4x128xi1>, vector<4x128xf32>
    %c110_i32 = arith.constant 110 : i32
    %385 = tpu.dynamic_rotate %172 by %c110_i32 dim 1 : vector<4x128xf32>, i32 -> vector<4x128xf32>
    %386 = arith.andi %48, %93 : vector<1x128xi1>
    %cst_113 = arith.constant 0.000000e+00 : f32
    %387 = vector.shape_cast %386 : vector<1x128xi1> to vector<1x128xi1>
    %388 = vector.broadcast %387 : vector<1x128xi1> to vector<4x128xi1>
    %389 = vector.broadcast %cst_113 : f32 to vector<4x128xf32>
    %390 = arith.select %388, %385, %389 : vector<4x128xi1>, vector<4x128xf32>
    %c0_114 = arith.constant 0 : index
    %c0_115 = arith.constant 0 : index
    %391 = vector.load %arg4[%c0_114, %c0_115] : memref<4x100xf32, #tpu.memory_space<vmem>>, vector<4x100xf32>
    %392 = tpu.concatenate %252, %258, %264, %270, %276, %282, %288, %294, %300, %306, %312, %318, %172, %324, %330, %336 in 0 : vector<4x128xf32>, vector<4x128xf32>, vector<4x128xf32>, vector<4x128xf32>, vector<4x128xf32>, vector<4x128xf32>, vector<4x128xf32>, vector<4x128xf32>, vector<4x128xf32>, vector<4x128xf32>, vector<4x128xf32>, vector<4x128xf32>, vector<4x128xf32>, vector<4x128xf32>, vector<4x128xf32>, vector<4x128xf32> -> vector<64x128xf32>
    %393 = tpu.concatenate %342, %348, %354, %360, %366, %372, %378, %384, %390 in 0 : vector<4x128xf32>, vector<4x128xf32>, vector<4x128xf32>, vector<4x128xf32>, vector<4x128xf32>, vector<4x128xf32>, vector<4x128xf32>, vector<4x128xf32>, vector<4x128xf32> -> vector<36x128xf32>
    %394 = tpu.concatenate %392, %393 in 0 : vector<64x128xf32>, vector<36x128xf32> -> vector<100x128xf32>
    %cst_116 = arith.constant dense<0.000000e+00> : vector<4x128xf32>
    %395 = tpu.matmul %391, %394, %cst_116 {dimension_numbers = #tpu.dot_dimension_numbers<[1], [0], [0], [1], [0, 0, 1, 1], [], []>} : vector<4x100xf32>, vector<100x128xf32>, vector<4x128xf32> -> vector<4x128xf32>
    %cst_117 = arith.constant dense<0.000000e+00> : vector<4xf32>
    %396 = vector.multi_reduction <add>, %395, %cst_117 [1] : vector<4x128xf32> to vector<4xf32>
    %397 = vector.shape_cast %396 : vector<4xf32> to vector<4x1xf32>
    %cst_118 = arith.constant 7.812500e-03 : f32
    %398 = vector.broadcast %cst_118 : f32 to vector<4x1xf32>
    %399 = arith.mulf %397, %398 : vector<4x1xf32>
    %400 = vector.broadcast %399 : vector<4x1xf32> to vector<4x128xf32>
    %401 = arith.subf %395, %400 : vector<4x128xf32>
    %402 = arith.mulf %401, %401 : vector<4x128xf32>
    %cst_119 = arith.constant dense<0.000000e+00> : vector<4xf32>
    %403 = vector.multi_reduction <add>, %402, %cst_119 [1] : vector<4x128xf32> to vector<4xf32>
    %404 = vector.shape_cast %403 : vector<4xf32> to vector<4x1xf32>
    %cst_120 = arith.constant 7.812500e-03 : f32
    %405 = vector.broadcast %cst_120 : f32 to vector<4x1xf32>
    %406 = arith.mulf %404, %405 : vector<4x1xf32>
    %407 = vector.extract_strided_slice %95 {offsets = [16, 0], sizes = [4, 1], strides = [1, 1]} : vector<24x1xf32> to vector<4x1xf32>
    %cst_121 = arith.constant 9.99999974E-6 : f32
    %408 = vector.broadcast %cst_121 : f32 to vector<4x1xf32>
    %409 = arith.addf %406, %408 : vector<4x1xf32>
    %410 = math.rsqrt %409 : vector<4x1xf32>
    %411 = arith.mulf %407, %410 : vector<4x1xf32>
    %412 = vector.broadcast %411 : vector<4x1xf32> to vector<4x128xf32>
    %413 = arith.mulf %401, %412 : vector<4x128xf32>
    %414 = vector.extract_strided_slice %97 {offsets = [16, 0], sizes = [4, 1], strides = [1, 1]} : vector<24x1xf32> to vector<4x1xf32>
    %415 = vector.broadcast %414 : vector<4x1xf32> to vector<4x128xf32>
    %416 = arith.addf %413, %415 : vector<4x128xf32>
    %cst_122 = arith.constant 0.000000e+00 : f32
    %417 = vector.broadcast %cst_122 : f32 to vector<4x128xf32>
    %418 = arith.maximumf %416, %417 : vector<4x128xf32>
    %c9_i32_123 = arith.constant 9 : i32
    %419 = tpu.dynamic_rotate %0 by %c9_i32_123 dim 1 : vector<8x128xf32>, i32 -> vector<8x128xf32>
    %420 = arith.andi %21, %66 : vector<1x128xi1>
    %cst_124 = arith.constant -3.40282347E+38 : f32
    %421 = vector.shape_cast %420 : vector<1x128xi1> to vector<1x128xi1>
    %422 = vector.broadcast %421 : vector<1x128xi1> to vector<8x128xi1>
    %423 = vector.broadcast %cst_124 : f32 to vector<8x128xf32>
    %424 = arith.select %422, %419, %423 : vector<8x128xi1>, vector<8x128xf32>
    %425 = arith.maximumf %0, %424 : vector<8x128xf32>
    %c8_i32_125 = arith.constant 8 : i32
    %426 = tpu.dynamic_rotate %0 by %c8_i32_125 dim 1 : vector<8x128xf32>, i32 -> vector<8x128xf32>
    %427 = arith.andi %21, %75 : vector<1x128xi1>
    %cst_126 = arith.constant -3.40282347E+38 : f32
    %428 = vector.shape_cast %427 : vector<1x128xi1> to vector<1x128xi1>
    %429 = vector.broadcast %428 : vector<1x128xi1> to vector<8x128xi1>
    %430 = vector.broadcast %cst_126 : f32 to vector<8x128xf32>
    %431 = arith.select %429, %426, %430 : vector<8x128xi1>, vector<8x128xf32>
    %432 = arith.maximumf %425, %431 : vector<8x128xf32>
    %c7_i32_127 = arith.constant 7 : i32
    %433 = tpu.dynamic_rotate %0 by %c7_i32_127 dim 1 : vector<8x128xf32>, i32 -> vector<8x128xf32>
    %434 = arith.andi %21, %84 : vector<1x128xi1>
    %cst_128 = arith.constant -3.40282347E+38 : f32
    %435 = vector.shape_cast %434 : vector<1x128xi1> to vector<1x128xi1>
    %436 = vector.broadcast %435 : vector<1x128xi1> to vector<8x128xi1>
    %437 = vector.broadcast %cst_128 : f32 to vector<8x128xf32>
    %438 = arith.select %436, %433, %437 : vector<8x128xi1>, vector<8x128xf32>
    %439 = arith.maximumf %432, %438 : vector<8x128xf32>
    %c1_i32_129 = arith.constant 1 : i32
    %440 = tpu.dynamic_rotate %0 by %c1_i32_129 dim 1 : vector<8x128xf32>, i32 -> vector<8x128xf32>
    %441 = arith.andi %30, %66 : vector<1x128xi1>
    %cst_130 = arith.constant -3.40282347E+38 : f32
    %442 = vector.shape_cast %441 : vector<1x128xi1> to vector<1x128xi1>
    %443 = vector.broadcast %442 : vector<1x128xi1> to vector<8x128xi1>
    %444 = vector.broadcast %cst_130 : f32 to vector<8x128xf32>
    %445 = arith.select %443, %440, %444 : vector<8x128xi1>, vector<8x128xf32>
    %446 = arith.maximumf %439, %445 : vector<8x128xf32>
    %c127_i32_131 = arith.constant 127 : i32
    %447 = tpu.dynamic_rotate %0 by %c127_i32_131 dim 1 : vector<8x128xf32>, i32 -> vector<8x128xf32>
    %448 = arith.andi %30, %84 : vector<1x128xi1>
    %cst_132 = arith.constant -3.40282347E+38 : f32
    %449 = vector.shape_cast %448 : vector<1x128xi1> to vector<1x128xi1>
    %450 = vector.broadcast %449 : vector<1x128xi1> to vector<8x128xi1>
    %451 = vector.broadcast %cst_132 : f32 to vector<8x128xf32>
    %452 = arith.select %450, %447, %451 : vector<8x128xi1>, vector<8x128xf32>
    %453 = arith.maximumf %446, %452 : vector<8x128xf32>
    %c121_i32_133 = arith.constant 121 : i32
    %454 = tpu.dynamic_rotate %0 by %c121_i32_133 dim 1 : vector<8x128xf32>, i32 -> vector<8x128xf32>
    %455 = arith.andi %39, %66 : vector<1x128xi1>
    %cst_134 = arith.constant -3.40282347E+38 : f32
    %456 = vector.shape_cast %455 : vector<1x128xi1> to vector<1x128xi1>
    %457 = vector.broadcast %456 : vector<1x128xi1> to vector<8x128xi1>
    %458 = vector.broadcast %cst_134 : f32 to vector<8x128xf32>
    %459 = arith.select %457, %454, %458 : vector<8x128xi1>, vector<8x128xf32>
    %460 = arith.maximumf %453, %459 : vector<8x128xf32>
    %c120_i32_135 = arith.constant 120 : i32
    %461 = tpu.dynamic_rotate %0 by %c120_i32_135 dim 1 : vector<8x128xf32>, i32 -> vector<8x128xf32>
    %462 = arith.andi %39, %75 : vector<1x128xi1>
    %cst_136 = arith.constant -3.40282347E+38 : f32
    %463 = vector.shape_cast %462 : vector<1x128xi1> to vector<1x128xi1>
    %464 = vector.broadcast %463 : vector<1x128xi1> to vector<8x128xi1>
    %465 = vector.broadcast %cst_136 : f32 to vector<8x128xf32>
    %466 = arith.select %464, %461, %465 : vector<8x128xi1>, vector<8x128xf32>
    %467 = arith.maximumf %460, %466 : vector<8x128xf32>
    %c119_i32_137 = arith.constant 119 : i32
    %468 = tpu.dynamic_rotate %0 by %c119_i32_137 dim 1 : vector<8x128xf32>, i32 -> vector<8x128xf32>
    %469 = arith.andi %39, %84 : vector<1x128xi1>
    %cst_138 = arith.constant -3.40282347E+38 : f32
    %470 = vector.shape_cast %469 : vector<1x128xi1> to vector<1x128xi1>
    %471 = vector.broadcast %470 : vector<1x128xi1> to vector<8x128xi1>
    %472 = vector.broadcast %cst_138 : f32 to vector<8x128xf32>
    %473 = arith.select %471, %468, %472 : vector<8x128xi1>, vector<8x128xf32>
    %474 = arith.maximumf %467, %473 : vector<8x128xf32>
    %475 = vector.extract_strided_slice %98 {offsets = [12, 0], sizes = [4, 8], strides = [1, 1]} : vector<16x8xf32> to vector<4x8xf32>
    %cst_139 = arith.constant dense<0.000000e+00> : vector<4x128xf32>
    %476 = tpu.matmul %475, %474, %cst_139 {dimension_numbers = #tpu.dot_dimension_numbers<[1], [0], [0], [1], [0, 0, 1, 1], [], []>} : vector<4x8xf32>, vector<8x128xf32>, vector<4x128xf32> -> vector<4x128xf32>
    %cst_140 = arith.constant dense<0.000000e+00> : vector<4xf32>
    %477 = vector.multi_reduction <add>, %476, %cst_140 [1] : vector<4x128xf32> to vector<4xf32>
    %478 = vector.shape_cast %477 : vector<4xf32> to vector<4x1xf32>
    %cst_141 = arith.constant 7.812500e-03 : f32
    %479 = vector.broadcast %cst_141 : f32 to vector<4x1xf32>
    %480 = arith.mulf %478, %479 : vector<4x1xf32>
    %481 = vector.broadcast %480 : vector<4x1xf32> to vector<4x128xf32>
    %482 = arith.subf %476, %481 : vector<4x128xf32>
    %483 = arith.mulf %482, %482 : vector<4x128xf32>
    %cst_142 = arith.constant dense<0.000000e+00> : vector<4xf32>
    %484 = vector.multi_reduction <add>, %483, %cst_142 [1] : vector<4x128xf32> to vector<4xf32>
    %485 = vector.shape_cast %484 : vector<4xf32> to vector<4x1xf32>
    %cst_143 = arith.constant 7.812500e-03 : f32
    %486 = vector.broadcast %cst_143 : f32 to vector<4x1xf32>
    %487 = arith.mulf %485, %486 : vector<4x1xf32>
    %488 = vector.extract_strided_slice %95 {offsets = [20, 0], sizes = [4, 1], strides = [1, 1]} : vector<24x1xf32> to vector<4x1xf32>
    %cst_144 = arith.constant 9.99999974E-6 : f32
    %489 = vector.broadcast %cst_144 : f32 to vector<4x1xf32>
    %490 = arith.addf %487, %489 : vector<4x1xf32>
    %491 = math.rsqrt %490 : vector<4x1xf32>
    %492 = arith.mulf %488, %491 : vector<4x1xf32>
    %493 = vector.broadcast %492 : vector<4x1xf32> to vector<4x128xf32>
    %494 = arith.mulf %482, %493 : vector<4x128xf32>
    %495 = vector.extract_strided_slice %97 {offsets = [20, 0], sizes = [4, 1], strides = [1, 1]} : vector<24x1xf32> to vector<4x1xf32>
    %496 = vector.broadcast %495 : vector<4x1xf32> to vector<4x128xf32>
    %497 = arith.addf %494, %496 : vector<4x128xf32>
    %cst_145 = arith.constant 0.000000e+00 : f32
    %498 = vector.broadcast %cst_145 : f32 to vector<4x128xf32>
    %499 = arith.maximumf %497, %498 : vector<4x128xf32>
    %500 = tpu.concatenate %124, %246, %418, %499 in 0 : vector<4x128xf32>, vector<4x128xf32>, vector<4x128xf32>, vector<4x128xf32> -> vector<16x128xf32>
    %c0_146 = arith.constant 0 : index
    %c0_147 = arith.constant 0 : index
    %501 = vector.load %arg6[%c0_146, %c0_147] : memref<16x128xf32, #tpu.memory_space<vmem>>, vector<16x128xf32>
    tpu.vector_store %arg6[%c0_146, %c0_147], %500 {strides = array<i32>} : memref<16x128xf32, #tpu.memory_space<vmem>>, vector<16x128xf32>,
    return
  }
}

</mosaic_0001>

<llo_original>
// kernel: inception_forward.1
$region0: #{inception_forward.1}
  #allocation0 [shape = 'u32[]', space=smem, size = 0x4, offset = 0x4, fixed_abs, tag = 'smem constant byte address 0x4 - core index']
  #allocation1 [shape = 'u32[144,128]{1,0:T(1,128)}', space=vmem, size = 0x12000, scoped, tag = 'internal scratch']
  %s0 = inlined_call_operand.vmem [shape: s32[2,128], index: 0, kind: input, shape index: {}]
  %s1 = inlined_call_operand.vmem [shape: f32[8,128], index: 1, kind: input, shape index: {}]
  %s2 = inlined_call_operand.vmem [shape: f32[16,8], index: 2, kind: input, shape index: {}]
  %s3 = inlined_call_operand.vmem [shape: f32[4,36], index: 3, kind: input, shape index: {}]
  %s4 = inlined_call_operand.vmem [shape: f32[4,100], index: 4, kind: input, shape index: {}]
  %s5 = inlined_call_operand.vmem [shape: f32[2,24,1], index: 5, kind: input, shape index: {}]
  %s6 = inlined_call_operand.vmem [shape: f32[16,128], index: 6, kind: output, shape index: {}]
  %s7 = sld [smem:[#allocation0]]
  $region34: #{inception_forward.1} parent=0
    _
  %s9 = ssub.s32 1, %s7
  %s10 = scalar_select 0, %s9, %s7
  // Predicated region
  $region2: #{inception_forward.1} parent=0 // pred_check
    _
  $region3: #{inception_forward.1} parent=0 // pred_check_branch
    %12 = sbr.rel (0) target = $region5
  $region4: #{inception_forward.1} parent=0 // pred_region
    _
  $region5: #{inception_forward.1} parent=0 // pred_fallthru
    _
  // Predicated region
  $region6: #{inception_forward.1} parent=0 // pred_check
    _
  $region7: #{inception_forward.1} parent=0 // pred_check_branch
    %14 = sbr.rel (0) target = $region9
  $region8: #{inception_forward.1} parent=0 // pred_region
    _
  $region9: #{inception_forward.1} parent=0 // pred_fallthru
    _
  // Predicated region
  $region10: #{inception_forward.1} parent=0 // pred_check
    _
  $region11: #{inception_forward.1} parent=0 // pred_check_branch
    %16 = sbr.rel (0) target = $region13
  $region12: #{inception_forward.1} parent=0 // pred_region
    _
  $region13: #{inception_forward.1} parent=0 // pred_fallthru
    _
  // Predicated region
  $region14: #{inception_forward.1} parent=0 // pred_check
    _
  $region15: #{inception_forward.1} parent=0 // pred_check_branch
    %18 = sbr.rel (0) target = $region17
  $region16: #{inception_forward.1} parent=0 // pred_region
    _
  $region17: #{inception_forward.1} parent=0 // pred_fallthru
    _
  // Predicated region
  $region18: #{inception_forward.1} parent=0 // pred_check
    _
  $region19: #{inception_forward.1} parent=0 // pred_check_branch
    %20 = sbr.rel (0) target = $region21
  $region20: #{inception_forward.1} parent=0 // pred_region
    _
  $region21: #{inception_forward.1} parent=0 // pred_fallthru
    _
  // Predicated region
  $region22: #{inception_forward.1} parent=0 // pred_check
    _
  $region23: #{inception_forward.1} parent=0 // pred_check_branch
    %22 = sbr.rel (0) target = $region25
  $region24: #{inception_forward.1} parent=0 // pred_region
    _
  $region25: #{inception_forward.1} parent=0 // pred_fallthru
    _
  %v23 = vld [vmem:[%s1] sm:$0xff]
  %v24 = vld [vmem:[%s0] sm:$0x3]
  %v25 = vadd.s32 %v24, 4294967294
  %vm26 = vcmp.ge.s32.totalorder %v25, 0
  %vm27 = vcmp.lt.s32.totalorder %v25, 8
  %vm28 = vmand %vm26, %vm27
  %v29 = vadd.s32 %v24, 4294967295
  %vm30 = vcmp.ge.s32.totalorder %v29, 0
  %vm31 = vcmp.lt.s32.totalorder %v29, 8
  %vm32 = vmand %vm30, %vm31
  %vm33 = vcmp.ge.s32.totalorder %v24, 0
  %vm34 = vcmp.lt.s32.totalorder %v24, 8
  %vm35 = vmand %vm33, %vm34
  %v36 = vadd.s32 %v24, 1
  %vm37 = vcmp.ge.s32.totalorder %v36, 0
  %vm38 = vcmp.lt.s32.totalorder %v36, 8
  %vm39 = vmand %vm37, %vm38
  %v40 = vadd.s32 %v24, 2
  %vm41 = vcmp.ge.s32.totalorder %v40, 0
  %vm42 = vcmp.lt.s32.totalorder %v40, 8
  %vm43 = vmand %vm41, %vm42
  %v44 = vld [vmem:[%s5] sm:$0xff]
  %v45 = vld [vmem:[%s5 + $0x8] sm:$0xff]
  %v46 = vld [vmem:[%s5 + $0x10] sm:$0xff]
  %s47 = scalar_lea.vmem %s5, 24
  %v48 = vld [vmem:[%s47] sm:$0xff]
  %v49 = vld [vmem:[%s47 + $0x8] sm:$0xff]
  %v50 = vld [vmem:[%s47 + $0x10] sm:$0xff]
  %v51 = vld [vmem:[%s2] sm:$0xff]
  %v52 = vld [vmem:[%s2 + $0x8] sm:$0xff]
  %vm53 = vcmask 64512
  %v55 = vsel %vm53, %v51, 0
  %v58 = vsel %vm53, %v52, 0
  %60 = vmatprep.subr.mxu0 0.0
  %61 = vmatpush1.msra.mxu0 0.0
  %62 = vmatprep.subr.mxu0 0.0
  %63 = vmatpush1.msra.mxu0 0.0
  %64 = vmatprep.subr.mxu0 0.0
  %65 = vmatpush1.msra.mxu0 0.0
  %66 = vmatprep.subr.mxu0 0.0
  %67 = vmatpush1.msra.mxu0 0.0
  %68 = vmatprep.subr.mxu0 0.0
  %69 = vmatpush1.msra.mxu0 0.0
  %70 = vmatprep.subr.mxu0 0.0
  %71 = vmatpush1.msra.mxu0 0.0
  %72 = vmatprep.subr.mxu0 0.0
  %73 = vmatpush1.msra.mxu0 0.0
  %74 = vmatprep.subr.mxu0 0.0
  %75 = vmatpush1.msra.mxu0 0.0
  %76 = vmatprep.subr.mxu0 0.0
  %77 = vmatpush1.msra.mxu0 0.0
  %78 = vmatprep.subr.mxu0 0.0
  %79 = vmatpush1.msra.mxu0 0.0
  %80 = vmatprep.subr.mxu0 0.0
  %81 = vmatpush1.msra.mxu0 0.0
  %82 = vmatprep.subr.mxu0 0.0
  %83 = vmatpush1.msra.mxu0 0.0
  %84 = vmatprep.subr.mxu0 0.0
  %85 = vmatpush1.msra.mxu0 0.0
  %86 = vmatprep.subr.mxu0 0.0
  %87 = vmatpush1.msra.mxu0 0.0
  %88 = vmatprep.subr.mxu0 0.0
  %89 = vmatpush1.msra.mxu0 0.0
  %90 = vmatprep.subr.mxu0 0.0
  %91 = vmatpush1.msra.mxu0 %v23
  %92 = vmatprep.subr.mxu0 0.0
  %93 = vmatpush2.msra.mxu0 0.0
  %94 = vmatprep.subr.mxu0 0.0
  %95 = vmatpush2.msra.mxu0 0.0
  %96 = vmatprep.subr.mxu0 0.0
  %97 = vmatpush2.msra.mxu0 0.0
  %98 = vmatprep.subr.mxu0 0.0
  %99 = vmatpush2.msra.mxu0 0.0
  %100 = vmatprep.subr.mxu0 0.0
  %101 = vmatpush2.msra.mxu0 0.0
  %102 = vmatprep.subr.mxu0 0.0
  %103 = vmatpush2.msra.mxu0 0.0
  %104 = vmatprep.subr.mxu0 0.0
  %105 = vmatpush2.msra.mxu0 0.0
  %106 = vmatprep.subr.mxu0 0.0
  %107 = vmatpush2.msra.mxu0 0.0
  %108 = vmatprep.subr.mxu0 0.0
  %109 = vmatpush2.msra.mxu0 0.0
  %110 = vmatprep.subr.mxu0 0.0
  %111 = vmatpush2.msra.mxu0 0.0
  %112 = vmatprep.subr.mxu0 0.0
  %113 = vmatpush2.msra.mxu0 0.0
  %114 = vmatprep.subr.mxu0 0.0
  %115 = vmatpush2.msra.mxu0 0.0
  %116 = vmatprep.subr.mxu0 0.0
  %117 = vmatpush2.msra.mxu0 0.0
  %118 = vmatprep.subr.mxu0 0.0
  %119 = vmatpush2.msra.mxu0 0.0
  %120 = vmatprep.subr.mxu0 0.0
  %121 = vmatpush2.msra.mxu0 0.0
  %122 = vmatprep.subr.mxu0 0.0
  %123 = vmatpush2.msra.mxu0 0.0
  %124 = vmatprep.mubr.f32.mxu0 0.0
  %125 = vmatmul.mubr.f32.gmra.mxu0 %v55
  %v126 = vpop.f32.mrf.mxu0
  %v127 = vadd.f32 0.0, %v126
  %v128 = vpop.f32.mrf.mxu0
  %129 = vmatprep.mubr.f32.mxu0 0.0
  %130 = vmatmul.mubr.f32.gmra.mxu0 %v58
  %v131 = vpop.f32.mrf.mxu0
  %v132 = vadd.f32 0.0, %v131
  %v133 = vpop.f32.mrf.mxu0
  %134 = vdwg.mxu0
  %vm135 = vcmask 1043456
  %v136 = vsel %vm135, %v127, 0.0
  %137 = vadd.xlane.f32.xlu0 %v136
  %v138 = vpop.xlane.xlu0 %137
  %v139 = vmul.f32 %v138, 0.0078125
  %v140 = vsub.f32 %v127, %v139
  %v141 = vmul.f32 %v140, %v140
  %v142 = vsel %vm135, %v141, 0.0
  %143 = vadd.xlane.f32.xlu0 %v142
  %v144 = vpop.xlane.xlu0 %143
  %v145 = vmul.f32 %v144, 0.0078125
  %v146 = vadd.f32 %v145, 1e-05
  %v147 = vrsqrt.pop %v146
  %v148 = vmul.f32 %v44, %v147
  %150 = vset.pattern.permute.xlu0 0
  %151 = vperm.xlu0 %150, %v148
  %v152 = vpop.permute.xlu0 %151
  %v154 = vmul.f32 %v140, %v152
  %156 = vset.pattern.permute.xlu0 0
  %157 = vperm.xlu0 %156, %v48
  %v158 = vpop.permute.xlu0 %157
  %v160 = vadd.f32 %v154, %v158
  %v161 = vmax.f32 %v160, 0.0
  %vm162 = vcmask 1047556
  %v163 = vsel %vm162, %v127, 0.0
  %164 = vadd.xlane.f32.xlu0 %v163
  %v165 = vpop.xlane.xlu0 %164
  %v166 = vmul.f32 %v165, 0.0078125
  %v167 = vsub.f32 %v127, %v166
  %v168 = vmul.f32 %v167, %v167
  %v169 = vsel %vm162, %v168, 0.0
  %170 = vadd.xlane.f32.xlu0 %v169
  %v171 = vpop.xlane.xlu0 %170
  %v172 = vmul.f32 %v171, 0.0078125
  %v173 = vadd.f32 %v172, 1e-05
  %v174 = vrsqrt.pop %v173
  %v175 = vmul.f32 %v44, %v174
  %177 = vset.pattern.permute.xlu0 0
  %178 = vperm.xlu0 %177, %v175
  %v179 = vpop.permute.xlu0 %178
  %v181 = vmul.f32 %v167, %v179
  %v182 = vadd.f32 %v181, %v158
  %v183 = vmax.f32 %v182, 0.0
  %v184 = vsel %vm135, %v132, 0.0
  %185 = vadd.xlane.f32.xlu0 %v184
  %v186 = vpop.xlane.xlu0 %185
  %v187 = vmul.f32 %v186, 0.0078125
  %v188 = vsub.f32 %v132, %v187
  %v189 = vmul.f32 %v188, %v188
  %v190 = vsel %vm135, %v189, 0.0
  %191 = vadd.xlane.f32.xlu0 %v190
  %v192 = vpop.xlane.xlu0 %191
  %v193 = vmul.f32 %v192, 0.0078125
  %v194 = vadd.f32 %v193, 1e-05
  %v195 = vrsqrt.pop %v194
  %v197 = vrot.slane %v195, 4
  %v199 = vmul.f32 %v45, %v197
  %201 = vset.pattern.permute.xlu0 0
  %202 = vperm.xlu0 %201, %v199
  %v203 = vpop.permute.xlu0 %202
  %v204 = vrot.slane %v203, 4
  %v206 = vmul.f32 %v188, %v204
  %208 = vset.pattern.permute.xlu0 0
  %209 = vperm.xlu0 %208, %v49
  %v210 = vpop.permute.xlu0 %209
  %v211 = vrot.slane %v210, 4
  %v213 = vadd.f32 %v206, %v211
  %v214 = vmax.f32 %v213, 0.0
  %v216 = vrot.slane %v183, 4
  %218 = vrot.lane.b32.xlu0 %v216, 9
  %v219 = vpop.permute.xlu0 %218
  %v220 = vsel %vm32, 1, 0
  %v221 = vrot.slane %v220, 1
  %vm222 = vcmp.ne.s32.totalorder %v221, 0
  %vm223 = vmand %vm32, %vm222
  %v224 = vsel %vm223, 1, 0
  %v225 = vlaneseq
  %v226 = vshrl.u32 %v225, 7
  %v227 = vsub.s32 0, %v226
  %v228 = vrot.slane %v224, %v227
  %vm229 = vcmp.eq.s32.totalorder %v228, 1
  %v230 = vsel %vm229, %v219, 0.0
  %231 = vrot.lane.b32.xlu0 %v216, 8
  %v232 = vpop.permute.xlu0 %231
  %v233 = vsel %vm35, 1, 0
  %v234 = vrot.slane %v233, 1
  %vm235 = vcmp.ne.s32.totalorder %v234, 0
  %vm236 = vmand %vm32, %vm235
  %v237 = vsel %vm236, 1, 0
  %v238 = vlaneseq
  %v239 = vshrl.u32 %v238, 7
  %v240 = vsub.s32 0, %v239
  %v241 = vrot.slane %v237, %v240
  %vm242 = vcmp.eq.s32.totalorder %v241, 1
  %v243 = vsel %vm242, %v232, 0.0
  %244 = vrot.lane.b32.xlu0 %v216, 7
  %v245 = vpop.permute.xlu0 %244
  %v246 = vsel %vm39, 1, 0
  %v247 = vrot.slane %v246, 1
  %vm248 = vcmp.ne.s32.totalorder %v247, 0
  %vm249 = vmand %vm32, %vm248
  %v250 = vsel %vm249, 1, 0
  %v251 = vlaneseq
  %v252 = vshrl.u32 %v251, 7
  %v253 = vsub.s32 0, %v252
  %v254 = vrot.slane %v250, %v253
  %vm255 = vcmp.eq.s32.totalorder %v254, 1
  %v256 = vsel %vm255, %v245, 0.0
  %257 = vrot.lane.b32.xlu0 %v216, 1
  %v258 = vpop.permute.xlu0 %257
  %vm259 = vmand %vm35, %vm222
  %v260 = vsel %vm259, 1, 0
  %v261 = vlaneseq
  %v262 = vshrl.u32 %v261, 7
  %v263 = vsub.s32 0, %v262
  %v264 = vrot.slane %v260, %v263
  %vm265 = vcmp.eq.s32.totalorder %v264, 1
  %v266 = vsel %vm265, %v258, 0.0
  %267 = vrot.lane.b32.xlu0 %v216, 127
  %v268 = vpop.permute.xlu0 %267
  %vm269 = vmand %vm35, %vm248
  %v270 = vsel %vm269, 1, 0
  %v271 = vlaneseq
  %v272 = vshrl.u32 %v271, 7
  %v273 = vsub.s32 0, %v272
  %v274 = vrot.slane %v270, %v273
  %vm275 = vcmp.eq.s32.totalorder %v274, 1
  %v276 = vsel %vm275, %v268, 0.0
  %277 = vrot.lane.b32.xlu0 %v216, 121
  %v278 = vpop.permute.xlu0 %277
  %vm279 = vmand %vm39, %vm222
  %v280 = vsel %vm279, 1, 0
  %v281 = vlaneseq
  %v282 = vshrl.u32 %v281, 7
  %v283 = vsub.s32 0, %v282
  %v284 = vrot.slane %v280, %v283
  %vm285 = vcmp.eq.s32.totalorder %v284, 1
  %v286 = vsel %vm285, %v278, 0.0
  %287 = vrot.lane.b32.xlu0 %v216, 120
  %v288 = vpop.permute.xlu0 %287
  %vm289 = vmand %vm39, %vm235
  %v290 = vsel %vm289, 1, 0
  %v291 = vlaneseq
  %v292 = vshrl.u32 %v291, 7
  %v293 = vsub.s32 0, %v292
  %v294 = vrot.slane %v290, %v293
  %vm295 = vcmp.eq.s32.totalorder %v294, 1
  %v296 = vsel %vm295, %v288, 0.0
  %297 = vrot.lane.b32.xlu0 %v216, 119
  %v298 = vpop.permute.xlu0 %297
  %vm299 = vmand %vm39, %vm248
  %v300 = vsel %vm299, 1, 0
  %v301 = vlaneseq
  %v302 = vshrl.u32 %v301, 7
  %v303 = vsub.s32 0, %v302
  %v304 = vrot.slane %v300, %v303
  %vm305 = vcmp.eq.s32.totalorder %v304, 1
  %v306 = vsel %vm305, %v298, 0.0
  %v307 = vld [vmem:[%s3] sm:$0xf]
  %v309 = vrot.slane %v243, 4
  %v312 = vrot.slane %v266, 4
  %v315 = vrot.slane %v276, 4
  %v318 = vrot.slane %v296, 4
  %v320 = vsel %vm135, %v230, %v309
  %v321 = vsel %vm135, %v256, %v312
  %v322 = vsel %vm135, %v216, %v315
  %v323 = vsel %vm135, %v286, %v318
  %vm324 = vcmask 293888
  %v326 = vsel %vm324, %v307, 0
  %v329 = vsel %vm135, %v306, 0
  %331 = vmatprep.subr.mxu0 0.0
  %332 = vmatpush1.msra.mxu0 0.0
  %333 = vmatprep.subr.mxu0 0.0
  %334 = vmatpush1.msra.mxu0 0.0
  %335 = vmatprep.subr.mxu0 0.0
  %336 = vmatpush1.msra.mxu0 0.0
  %337 = vmatprep.subr.mxu0 0.0
  %338 = vmatpush1.msra.mxu0 0.0
  %339 = vmatprep.subr.mxu0 0.0
  %340 = vmatpush1.msra.mxu0 0.0
  %341 = vmatprep.subr.mxu0 0.0
  %342 = vmatpush1.msra.mxu0 0.0
  %343 = vmatprep.subr.mxu0 0.0
  %344 = vmatpush1.msra.mxu0 0.0
  %345 = vmatprep.subr.mxu0 0.0
  %346 = vmatpush1.msra.mxu0 0.0
  %347 = vmatprep.subr.mxu0 0.0
  %348 = vmatpush1.msra.mxu0 0.0
  %349 = vmatprep.subr.mxu0 0.0
  %350 = vmatpush1.msra.mxu0 0.0
  %351 = vmatprep.subr.mxu0 0.0
  %352 = vmatpush1.msra.mxu0 0.0
  %353 = vmatprep.subr.mxu0 0.0
  %354 = vmatpush1.msra.mxu0 %v329
  %355 = vmatprep.subr.mxu0 0.0
  %356 = vmatpush1.msra.mxu0 %v323
  %357 = vmatprep.subr.mxu0 0.0
  %358 = vmatpush1.msra.mxu0 %v322
  %359 = vmatprep.subr.mxu0 0.0
  %360 = vmatpush1.msra.mxu0 %v321
  %361 = vmatprep.subr.mxu0 0.0
  %362 = vmatpush1.msra.mxu0 %v320
  %363 = vmatprep.subr.mxu0 0.0
  %364 = vmatpush2.msra.mxu0 0.0
  %365 = vmatprep.subr.mxu0 0.0
  %366 = vmatpush2.msra.mxu0 0.0
  %367 = vmatprep.subr.mxu0 0.0
  %368 = vmatpush2.msra.mxu0 0.0
  %369 = vmatprep.subr.mxu0 0.0
  %370 = vmatpush2.msra.mxu0 0.0
  %371 = vmatprep.subr.mxu0 0.0
  %372 = vmatpush2.msra.mxu0 0.0
  %373 = vmatprep.subr.mxu0 0.0
  %374 = vmatpush2.msra.mxu0 0.0
  %375 = vmatprep.subr.mxu0 0.0
  %376 = vmatpush2.msra.mxu0 0.0
  %377 = vmatprep.subr.mxu0 0.0
  %378 = vmatpush2.msra.mxu0 0.0
  %379 = vmatprep.subr.mxu0 0.0
  %380 = vmatpush2.msra.mxu0 0.0
  %381 = vmatprep.subr.mxu0 0.0
  %382 = vmatpush2.msra.mxu0 0.0
  %383 = vmatprep.subr.mxu0 0.0
  %384 = vmatpush2.msra.mxu0 0.0
  %385 = vmatprep.subr.mxu0 0.0
  %386 = vmatpush2.msra.mxu0 0.0
  %387 = vmatprep.subr.mxu0 0.0
  %388 = vmatpush2.msra.mxu0 0.0
  %389 = vmatprep.subr.mxu0 0.0
  %390 = vmatpush2.msra.mxu0 0.0
  %391 = vmatprep.subr.mxu0 0.0
  %392 = vmatpush2.msra.mxu0 0.0
  %393 = vmatprep.subr.mxu0 0.0
  %394 = vmatpush2.msra.mxu0 0.0
  %395 = vmatprep.mubr.f32.mxu0 0.0
  %396 = vmatmul.mubr.f32.gmra.mxu0 %v326
  %v397 = vpop.f32.mrf.mxu0
  %v398 = vadd.f32 0.0, %v397
  %v399 = vpop.f32.mrf.mxu0
  %400 = vdwg.mxu0
  %v401 = vsel %vm135, %v398, 0.0
  %402 = vadd.xlane.f32.xlu0 %v401
  %v403 = vpop.xlane.xlu0 %402
  %v404 = vmul.f32 %v403, 0.0078125
  %v405 = vsub.f32 %v398, %v404
  %v406 = vmul.f32 %v405, %v405
  %v407 = vsel %vm135, %v406, 0.0
  %408 = vadd.xlane.f32.xlu0 %v407
  %v409 = vpop.xlane.xlu0 %408
  %v410 = vmul.f32 %v409, 0.0078125
  %v411 = vadd.f32 %v410, 1e-05
  %v412 = vrsqrt.pop %v411
  %v413 = vmul.f32 %v45, %v412
  %415 = vset.pattern.permute.xlu0 0
  %416 = vperm.xlu0 %415, %v413
  %v417 = vpop.permute.xlu0 %416
  %v419 = vmul.f32 %v405, %v417
  %v421 = vadd.f32 %v419, %v210
  %v422 = vmax.f32 %v421, 0.0
  %423 = vrot.lane.b32.xlu0 %v214, 18
  %v424 = vpop.permute.xlu0 %423
  %v425 = vsel %vm28, 1, 0
  %v426 = vrot.slane %v425, 1
  %vm427 = vcmp.ne.s32.totalorder %v426, 0
  %vm428 = vmand %vm28, %vm427
  %v429 = vsel %vm428, 1, 0
  %v430 = vlaneseq
  %v431 = vshrl.u32 %v430, 7
  %v432 = vsub.s32 0, %v431
  %v433 = vrot.slane %v429, %v432
  %vm434 = vcmp.eq.s32.totalorder %v433, 1
  %v435 = vsel %vm434, %v424, 0.0
  %436 = vrot.lane.b32.xlu0 %v214, 17
  %v437 = vpop.permute.xlu0 %436
  %vm438 = vmand %vm28, %vm222
  %v439 = vsel %vm438, 1, 0
  %v440 = vlaneseq
  %v441 = vshrl.u32 %v440, 7
  %v442 = vsub.s32 0, %v441
  %v443 = vrot.slane %v439, %v442
  %vm444 = vcmp.eq.s32.totalorder %v443, 1
  %v445 = vsel %vm444, %v437, 0.0
  %446 = vrot.lane.b32.xlu0 %v214, 16
  %v447 = vpop.permute.xlu0 %446
  %vm448 = vmand %vm28, %vm235
  %v449 = vsel %vm448, 1, 0
  %v450 = vlaneseq
  %v451 = vshrl.u32 %v450, 7
  %v452 = vsub.s32 0, %v451
  %v453 = vrot.slane %v449, %v452
  %vm454 = vcmp.eq.s32.totalorder %v453, 1
  %v455 = vsel %vm454, %v447, 0.0
  %456 = vrot.lane.b32.xlu0 %v214, 15
  %v457 = vpop.permute.xlu0 %456
  %vm458 = vmand %vm28, %vm248
  %v459 = vsel %vm458, 1, 0
  %v460 = vlaneseq
  %v461 = vshrl.u32 %v460, 7
  %v462 = vsub.s32 0, %v461
  %v463 = vrot.slane %v459, %v462
  %vm464 = vcmp.eq.s32.totalorder %v463, 1
  %v465 = vsel %vm464, %v457, 0.0
  %466 = vrot.lane.b32.xlu0 %v214, 14
  %v467 = vpop.permute.xlu0 %466
  %v468 = vsel %vm43, 1, 0
  %v469 = vrot.slane %v468, 1
  %vm470 = vcmp.ne.s32.totalorder %v469, 0
  %vm471 = vmand %vm28, %vm470
  %v472 = vsel %vm471, 1, 0
  %v473 = vlaneseq
  %v474 = vshrl.u32 %v473, 7
  %v475 = vsub.s32 0, %v474
  %v476 = vrot.slane %v472, %v475
  %vm477 = vcmp.eq.s32.totalorder %v476, 1
  %v478 = vsel %vm477, %v467, 0.0
  %479 = vrot.lane.b32.xlu0 %v214, 10
  %v480 = vpop.permute.xlu0 %479
  %vm481 = vmand %vm32, %vm427
  %v482 = vsel %vm481, 1, 0
  %v483 = vlaneseq
  %v484 = vshrl.u32 %v483, 7
  %v485 = vsub.s32 0, %v484
  %v486 = vrot.slane %v482, %v485
  %vm487 = vcmp.eq.s32.totalorder %v486, 1
  %v488 = vsel %vm487, %v480, 0.0
  %489 = vrot.lane.b32.xlu0 %v214, 9
  %v490 = vpop.permute.xlu0 %489
  %v491 = vsel %vm229, %v490, 0.0
  %492 = vrot.lane.b32.xlu0 %v214, 8
  %v493 = vpop.permute.xlu0 %492
  %v494 = vsel %vm242, %v493, 0.0
  %495 = vrot.lane.b32.xlu0 %v214, 7
  %v496 = vpop.permute.xlu0 %495
  %v497 = vsel %vm255, %v496, 0.0
  %498 = vrot.lane.b32.xlu0 %v214, 6
  %v499 = vpop.permute.xlu0 %498
  %vm500 = vmand %vm32, %vm470
  %v501 = vsel %vm500, 1, 0
  %v502 = vlaneseq
  %v503 = vshrl.u32 %v502, 7
  %v504 = vsub.s32 0, %v503
  %v505 = vrot.slane %v501, %v504
  %vm506 = vcmp.eq.s32.totalorder %v505, 1
  %v507 = vsel %vm506, %v499, 0.0
  %508 = vrot.lane.b32.xlu0 %v214, 2
  %v509 = vpop.permute.xlu0 %508
  %vm510 = vmand %vm35, %vm427
  %v511 = vsel %vm510, 1, 0
  %v512 = vlaneseq
  %v513 = vshrl.u32 %v512, 7
  %v514 = vsub.s32 0, %v513
  %v515 = vrot.slane %v511, %v514
  %vm516 = vcmp.eq.s32.totalorder %v515, 1
  %v517 = vsel %vm516, %v509, 0.0
  %518 = vrot.lane.b32.xlu0 %v214, 1
  %v519 = vpop.permute.xlu0 %518
  %v520 = vsel %vm265, %v519, 0.0
  %521 = vrot.lane.b32.xlu0 %v214, 127
  %v522 = vpop.permute.xlu0 %521
  %v523 = vsel %vm275, %v522, 0.0
  %524 = vrot.lane.b32.xlu0 %v214, 126
  %v525 = vpop.permute.xlu0 %524
  %vm526 = vmand %vm35, %vm470
  %v527 = vsel %vm526, 1, 0
  %v528 = vlaneseq
  %v529 = vshrl.u32 %v528, 7
  %v530 = vsub.s32 0, %v529
  %v531 = vrot.slane %v527, %v530
  %vm532 = vcmp.eq.s32.totalorder %v531, 1
  %v533 = vsel %vm532, %v525, 0.0
  %534 = vrot.lane.b32.xlu0 %v214, 122
  %v535 = vpop.permute.xlu0 %534
  %vm536 = vmand %vm39, %vm427
  %v537 = vsel %vm536, 1, 0
  %v538 = vlaneseq
  %v539 = vshrl.u32 %v538, 7
  %v540 = vsub.s32 0, %v539
  %v541 = vrot.slane %v537, %v540
  %vm542 = vcmp.eq.s32.totalorder %v541, 1
  %v543 = vsel %vm542, %v535, 0.0
  %544 = vrot.lane.b32.xlu0 %v214, 121
  %v545 = vpop.permute.xlu0 %544
  %v546 = vsel %vm285, %v545, 0.0
  %547 = vrot.lane.b32.xlu0 %v214, 120
  %v548 = vpop.permute.xlu0 %547
  %v549 = vsel %vm295, %v548, 0.0
  %550 = vrot.lane.b32.xlu0 %v214, 119
  %v551 = vpop.permute.xlu0 %550
  %v552 = vsel %vm305, %v551, 0.0
  %553 = vrot.lane.b32.xlu0 %v214, 118
  %v554 = vpop.permute.xlu0 %553
  %vm555 = vmand %vm39, %vm470
  %v556 = vsel %vm555, 1, 0
  %v557 = vlaneseq
  %v558 = vshrl.u32 %v557, 7
  %v559 = vsub.s32 0, %v558
  %v560 = vrot.slane %v556, %v559
  %vm561 = vcmp.eq.s32.totalorder %v560, 1
  %v562 = vsel %vm561, %v554, 0.0
  %563 = vrot.lane.b32.xlu0 %v214, 114
  %v564 = vpop.permute.xlu0 %563
  %vm565 = vmand %vm43, %vm427
  %v566 = vsel %vm565, 1, 0
  %v567 = vlaneseq
  %v568 = vshrl.u32 %v567, 7
  %v569 = vsub.s32 0, %v568
  %v570 = vrot.slane %v566, %v569
  %vm571 = vcmp.eq.s32.totalorder %v570, 1
  %v572 = vsel %vm571, %v564, 0.0
  %573 = vrot.lane.b32.xlu0 %v214, 113
  %v574 = vpop.permute.xlu0 %573
  %vm575 = vmand %vm43, %vm222
  %v576 = vsel %vm575, 1, 0
  %v577 = vlaneseq
  %v578 = vshrl.u32 %v577, 7
  %v579 = vsub.s32 0, %v578
  %v580 = vrot.slane %v576, %v579
  %vm581 = vcmp.eq.s32.totalorder %v580, 1
  %v582 = vsel %vm581, %v574, 0.0
  %583 = vrot.lane.b32.xlu0 %v214, 112
  %v584 = vpop.permute.xlu0 %583
  %vm585 = vmand %vm43, %vm235
  %v586 = vsel %vm585, 1, 0
  %v587 = vlaneseq
  %v588 = vshrl.u32 %v587, 7
  %v589 = vsub.s32 0, %v588
  %v590 = vrot.slane %v586, %v589
  %vm591 = vcmp.eq.s32.totalorder %v590, 1
  %v592 = vsel %vm591, %v584, 0.0
  %593 = vrot.lane.b32.xlu0 %v214, 111
  %v594 = vpop.permute.xlu0 %593
  %vm595 = vmand %vm43, %vm248
  %v596 = vsel %vm595, 1, 0
  %v597 = vlaneseq
  %v598 = vshrl.u32 %v597, 7
  %v599 = vsub.s32 0, %v598
  %v600 = vrot.slane %v596, %v599
  %vm601 = vcmp.eq.s32.totalorder %v600, 1
  %v602 = vsel %vm601, %v594, 0.0
  %603 = vrot.lane.b32.xlu0 %v214, 110
  %v604 = vpop.permute.xlu0 %603
  %vm605 = vmand %vm43, %vm470
  %v606 = vsel %vm605, 1, 0
  %v607 = vlaneseq
  %v608 = vshrl.u32 %v607, 7
  %v609 = vsub.s32 0, %v608
  %v610 = vrot.slane %v606, %v609
  %vm611 = vcmp.eq.s32.totalorder %v610, 1
  %v612 = vsel %vm611, %v604, 0.0
  %v613 = vld [vmem:[%s4] sm:$0xf]
  %v615 = vrot.slane %v445, 4
  %v618 = vrot.slane %v465, 4
  %v621 = vrot.slane %v488, 4
  %v624 = vrot.slane %v494, 4
  %v627 = vrot.slane %v507, 4
  %v630 = vrot.slane %v520, 4
  %v633 = vrot.slane %v523, 4
  %v636 = vrot.slane %v543, 4
  %v638 = vsel %vm135, %v435, %v615
  %v639 = vsel %vm135, %v455, %v618
  %v640 = vsel %vm135, %v478, %v621
  %v641 = vsel %vm135, %v491, %v624
  %v642 = vsel %vm135, %v497, %v627
  %v643 = vsel %vm135, %v517, %v630
  %v644 = vsel %vm135, %v214, %v633
  %v645 = vsel %vm135, %v533, %v636
  %v647 = vrot.slane %v549, 4
  %v650 = vrot.slane %v562, 4
  %v653 = vrot.slane %v582, 4
  %v656 = vrot.slane %v602, 4
  %v658 = vsel %vm135, %v546, %v647
  %v659 = vsel %vm135, %v552, %v650
  %v660 = vsel %vm135, %v572, %v653
  %v661 = vsel %vm135, %v592, %v656
  %vm662 = vcmask 818176
  %v664 = vsel %vm662, %v613, 0
  %v667 = vsel %vm135, %v612, 0
  %669 = vmatprep.subr.mxu0 0.0
  %670 = vmatpush1.msra.mxu0 0.0
  %671 = vmatprep.subr.mxu0 0.0
  %672 = vmatpush1.msra.mxu0 0.0
  %673 = vmatprep.subr.mxu0 0.0
  %674 = vmatpush1.msra.mxu0 0.0
  %675 = vmatprep.subr.mxu0 0.0
  %676 = vmatpush1.msra.mxu0 %v667
  %677 = vmatprep.subr.mxu0 0.0
  %678 = vmatpush1.msra.mxu0 %v661
  %679 = vmatprep.subr.mxu0 0.0
  %680 = vmatpush1.msra.mxu0 %v660
  %681 = vmatprep.subr.mxu0 0.0
  %682 = vmatpush1.msra.mxu0 %v659
  %683 = vmatprep.subr.mxu0 0.0
  %684 = vmatpush1.msra.mxu0 %v658
  %685 = vmatprep.subr.mxu0 0.0
  %686 = vmatpush1.msra.mxu0 %v645
  %687 = vmatprep.subr.mxu0 0.0
  %688 = vmatpush1.msra.mxu0 %v644
  %689 = vmatprep.subr.mxu0 0.0
  %690 = vmatpush1.msra.mxu0 %v643
  %691 = vmatprep.subr.mxu0 0.0
  %692 = vmatpush1.msra.mxu0 %v642
  %693 = vmatprep.subr.mxu0 0.0
  %694 = vmatpush1.msra.mxu0 %v641
  %695 = vmatprep.subr.mxu0 0.0
  %696 = vmatpush1.msra.mxu0 %v640
  %697 = vmatprep.subr.mxu0 0.0
  %698 = vmatpush1.msra.mxu0 %v639
  %699 = vmatprep.subr.mxu0 0.0
  %700 = vmatpush1.msra.mxu0 %v638
  %701 = vmatprep.subr.mxu0 0.0
  %702 = vmatpush2.msra.mxu0 0.0
  %703 = vmatprep.subr.mxu0 0.0
  %704 = vmatpush2.msra.mxu0 0.0
  %705 = vmatprep.subr.mxu0 0.0
  %706 = vmatpush2.msra.mxu0 0.0
  %707 = vmatprep.subr.mxu0 0.0
  %708 = vmatpush2.msra.mxu0 0.0
  %709 = vmatprep.subr.mxu0 0.0
  %710 = vmatpush2.msra.mxu0 0.0
  %711 = vmatprep.subr.mxu0 0.0
  %712 = vmatpush2.msra.mxu0 0.0
  %713 = vmatprep.subr.mxu0 0.0
  %714 = vmatpush2.msra.mxu0 0.0
  %715 = vmatprep.subr.mxu0 0.0
  %716 = vmatpush2.msra.mxu0 0.0
  %717 = vmatprep.subr.mxu0 0.0
  %718 = vmatpush2.msra.mxu0 0.0
  %719 = vmatprep.subr.mxu0 0.0
  %720 = vmatpush2.msra.mxu0 0.0
  %721 = vmatprep.subr.mxu0 0.0
  %722 = vmatpush2.msra.mxu0 0.0
  %723 = vmatprep.subr.mxu0 0.0
  %724 = vmatpush2.msra.mxu0 0.0
  %725 = vmatprep.subr.mxu0 0.0
  %726 = vmatpush2.msra.mxu0 0.0
  %727 = vmatprep.subr.mxu0 0.0
  %728 = vmatpush2.msra.mxu0 0.0
  %729 = vmatprep.subr.mxu0 0.0
  %730 = vmatpush2.msra.mxu0 0.0
  %731 = vmatprep.subr.mxu0 0.0
  %732 = vmatpush2.msra.mxu0 0.0
  %733 = vmatprep.mubr.f32.mxu0 0.0
  %734 = vmatmul.mubr.f32.gmra.mxu0 %v664
  %v735 = vpop.f32.mrf.mxu0
  %v736 = vadd.f32 0.0, %v735
  %v737 = vpop.f32.mrf.mxu0
  %738 = vdwg.mxu0
  %v739 = vsel %vm135, %v736, 0.0
  %740 = vadd.xlane.f32.xlu0 %v739
  %v741 = vpop.xlane.xlu0 %740
  %v742 = vmul.f32 %v741, 0.0078125
  %v743 = vsub.f32 %v736, %v742
  %v744 = vmul.f32 %v743, %v743
  %v745 = vsel %vm135, %v744, 0.0
  %746 = vadd.xlane.f32.xlu0 %v745
  %v747 = vpop.xlane.xlu0 %746
  %v748 = vmul.f32 %v747, 0.0078125
  %v749 = vadd.f32 %v748, 1e-05
  %v750 = vrsqrt.pop %v749
  %v751 = vmul.f32 %v46, %v750
  %753 = vset.pattern.permute.xlu0 0
  %754 = vperm.xlu0 %753, %v751
  %v755 = vpop.permute.xlu0 %754
  %v757 = vmul.f32 %v743, %v755
  %759 = vset.pattern.permute.xlu0 0
  %760 = vperm.xlu0 %759, %v50
  %v761 = vpop.permute.xlu0 %760
  %v763 = vadd.f32 %v757, %v761
  %v764 = vmax.f32 %v763, 0.0
  %765 = vrot.lane.b32.xlu0 %v23, 9
  %v766 = vpop.permute.xlu0 %765
  %v767 = vsel %vm229, %v766, -3.4028235e+38
  %v768 = vmax.f32 %v23, %v767
  %769 = vrot.lane.b32.xlu0 %v23, 8
  %v770 = vpop.permute.xlu0 %769
  %v771 = vsel %vm242, %v770, -3.4028235e+38
  %v772 = vmax.f32 %v768, %v771
  %773 = vrot.lane.b32.xlu0 %v23, 7
  %v774 = vpop.permute.xlu0 %773
  %v775 = vsel %vm255, %v774, -3.4028235e+38
  %v776 = vmax.f32 %v772, %v775
  %777 = vrot.lane.b32.xlu0 %v23, 1
  %v778 = vpop.permute.xlu0 %777
  %v779 = vsel %vm265, %v778, -3.4028235e+38
  %v780 = vmax.f32 %v776, %v779
  %781 = vrot.lane.b32.xlu0 %v23, 127
  %v782 = vpop.permute.xlu0 %781
  %v783 = vsel %vm275, %v782, -3.4028235e+38
  %v784 = vmax.f32 %v780, %v783
  %785 = vrot.lane.b32.xlu0 %v23, 121
  %v786 = vpop.permute.xlu0 %785
  %v787 = vsel %vm285, %v786, -3.4028235e+38
  %v788 = vmax.f32 %v784, %v787
  %789 = vrot.lane.b32.xlu0 %v23, 120
  %v790 = vpop.permute.xlu0 %789
  %v791 = vsel %vm295, %v790, -3.4028235e+38
  %v792 = vmax.f32 %v788, %v791
  %793 = vrot.lane.b32.xlu0 %v23, 119
  %v794 = vpop.permute.xlu0 %793
  %v795 = vsel %vm305, %v794, -3.4028235e+38
  %v796 = vmax.f32 %v792, %v795
  %v797 = vrot.slane %v52, 4
  %v798 = vsel %vm53, %v797, 0
  %800 = vmatprep.subr.mxu0 0.0
  %801 = vmatpush1.msra.mxu0 0.0
  %802 = vmatprep.subr.mxu0 0.0
  %803 = vmatpush1.msra.mxu0 0.0
  %804 = vmatprep.subr.mxu0 0.0
  %805 = vmatpush1.msra.mxu0 0.0
  %806 = vmatprep.subr.mxu0 0.0
  %807 = vmatpush1.msra.mxu0 0.0
  %808 = vmatprep.subr.mxu0 0.0
  %809 = vmatpush1.msra.mxu0 0.0
  %810 = vmatprep.subr.mxu0 0.0
  %811 = vmatpush1.msra.mxu0 0.0
  %812 = vmatprep.subr.mxu0 0.0
  %813 = vmatpush1.msra.mxu0 0.0
  %814 = vmatprep.subr.mxu0 0.0
  %815 = vmatpush1.msra.mxu0 0.0
  %816 = vmatprep.subr.mxu0 0.0
  %817 = vmatpush1.msra.mxu0 0.0
  %818 = vmatprep.subr.mxu0 0.0
  %819 = vmatpush1.msra.mxu0 0.0
  %820 = vmatprep.subr.mxu0 0.0
  %821 = vmatpush1.msra.mxu0 0.0
  %822 = vmatprep.subr.mxu0 0.0
  %823 = vmatpush1.msra.mxu0 0.0
  %824 = vmatprep.subr.mxu0 0.0
  %825 = vmatpush1.msra.mxu0 0.0
  %826 = vmatprep.subr.mxu0 0.0
  %827 = vmatpush1.msra.mxu0 0.0
  %828 = vmatprep.subr.mxu0 0.0
  %829 = vmatpush1.msra.mxu0 0.0
  %830 = vmatprep.subr.mxu0 0.0
  %831 = vmatpush1.msra.mxu0 %v796
  %832 = vmatprep.subr.mxu0 0.0
  %833 = vmatpush2.msra.mxu0 0.0
  %834 = vmatprep.subr.mxu0 0.0
  %835 = vmatpush2.msra.mxu0 0.0
  %836 = vmatprep.subr.mxu0 0.0
  %837 = vmatpush2.msra.mxu0 0.0
  %838 = vmatprep.subr.mxu0 0.0
  %839 = vmatpush2.msra.mxu0 0.0
  %840 = vmatprep.subr.mxu0 0.0
  %841 = vmatpush2.msra.mxu0 0.0
  %842 = vmatprep.subr.mxu0 0.0
  %843 = vmatpush2.msra.mxu0 0.0
  %844 = vmatprep.subr.mxu0 0.0
  %845 = vmatpush2.msra.mxu0 0.0
  %846 = vmatprep.subr.mxu0 0.0
  %847 = vmatpush2.msra.mxu0 0.0
  %848 = vmatprep.subr.mxu0 0.0
  %849 = vmatpush2.msra.mxu0 0.0
  %850 = vmatprep.subr.mxu0 0.0
  %851 = vmatpush2.msra.mxu0 0.0
  %852 = vmatprep.subr.mxu0 0.0
  %853 = vmatpush2.msra.mxu0 0.0
  %854 = vmatprep.subr.mxu0 0.0
  %855 = vmatpush2.msra.mxu0 0.0
  %856 = vmatprep.subr.mxu0 0.0
  %857 = vmatpush2.msra.mxu0 0.0
  %858 = vmatprep.subr.mxu0 0.0
  %859 = vmatpush2.msra.mxu0 0.0
  %860 = vmatprep.subr.mxu0 0.0
  %861 = vmatpush2.msra.mxu0 0.0
  %862 = vmatprep.subr.mxu0 0.0
  %863 = vmatpush2.msra.mxu0 0.0
  %864 = vmatprep.mubr.f32.mxu0 0.0
  %865 = vmatmul.mubr.f32.gmra.mxu0 %v798
  %v866 = vpop.f32.mrf.mxu0
  %v867 = vadd.f32 0.0, %v866
  %v868 = vpop.f32.mrf.mxu0
  %869 = vdwg.mxu0
  %v870 = vsel %vm135, %v867, 0.0
  %871 = vadd.xlane.f32.xlu0 %v870
  %v872 = vpop.xlane.xlu0 %871
  %v873 = vmul.f32 %v872, 0.0078125
  %v874 = vsub.f32 %v867, %v873
  %v875 = vmul.f32 %v874, %v874
  %v876 = vsel %vm135, %v875, 0.0
  %877 = vadd.xlane.f32.xlu0 %v876
  %v878 = vpop.xlane.xlu0 %877
  %v879 = vmul.f32 %v878, 0.0078125
  %v880 = vadd.f32 %v879, 1e-05
  %v881 = vrsqrt.pop %v880
  %v883 = vrot.slane %v881, 4
  %v885 = vmul.f32 %v46, %v883
  %887 = vset.pattern.permute.xlu0 0
  %888 = vperm.xlu0 %887, %v885
  %v889 = vpop.permute.xlu0 %888
  %v890 = vrot.slane %v889, 4
  %v892 = vmul.f32 %v874, %v890
  %v893 = vrot.slane %v761, 4
  %v895 = vadd.f32 %v892, %v893
  %v896 = vmax.f32 %v895, 0.0
  %v898 = vrot.slane %v422, 4
  %v901 = vrot.slane %v896, 4
  %v903 = vsel %vm135, %v161, %v898
  %v904 = vsel %vm135, %v764, %v901
  %905 = vst [vmem:[%s6] sm:$0xff] %v903
  %906 = vst [vmem:[%s6 + $0x8] sm:$0xff] %v904
  // Predicated region
  $region26: #{inception_forward.1} parent=0 // pred_check
    _
  $region27: #{inception_forward.1} parent=0 // pred_check_branch
    %908 = sbr.rel (0) target = $region29
  $region28: #{inception_forward.1} parent=0 // pred_region
    _
  $region29: #{inception_forward.1} parent=0 // pred_fallthru
    _
  // Predicated region
  $region30: #{inception_forward.1} parent=0 // pred_check
    _
  $region31: #{inception_forward.1} parent=0 // pred_check_branch
    %910 = sbr.rel (0) target = $region33
  $region32: #{inception_forward.1} parent=0 // pred_region
    _
  $region33: #{inception_forward.1} parent=0 // pred_fallthru
    _

</llo_original>
